<compile_context>
chip_gen: v7x
topology: tpu7x:2x2x1
jax: 0.10.0
libtpu: 0.0.40
codegen_flags: <defaults>
</compile_context>

<pallas_src>
import functools
import math

import jax
import jax.numpy as jnp
from jax import lax
from jax.experimental import pallas as pl
from jax.experimental.pallas import tpu as pltpu


def _attn_kernel(x_ref, wq_ref, wk_ref, wv_ref, bq_ref, bk_ref, bv_ref,
                 mask_ref, out_ref, ctx_scr, *, num_heads, head_dim,
                 heads_per_group):
    # x_ref   : (Bb, S, H)      hidden states, MXU dtype (bf16 in production)
    # w*_ref  : (nG, H, gw)     per-head-group projection weights (W.T of
    #                           nn.Linear; Wq pre-scaled by 1/sqrt(dh))
    # b*_ref  : (nG, 1, gw)     biases (bq pre-scaled), f32
    # mask_ref: (Bb, 1, S)      additive attention mask, f32
    # out_ref : (Bb, S, H)      lane-dense output
    # ctx_scr : (nG, Bb, S, gw) VMEM scratch; head-group on the leading axis so
    #                           the fori_loop only needs major-dim dynamic stores
    bb, s, h = x_ref.shape
    gw = heads_per_group * head_dim
    n_groups = num_heads // heads_per_group
    mxu_dtype = x_ref.dtype

    x = x_ref[...].reshape(bb * s, h)        # leading-dim merge (S % 8 == 0)
    mask = mask_ref[...]                     # (Bb, 1, S), f32

    def group_body(g, carry):
        # Per-group projections: full-H contraction, output gw lanes.
        # 1/sqrt(dh) is already folded into Wq/bq; biases added in f32.
        q = jnp.dot(x, wq_ref[g], preferred_element_type=jnp.float32) + bq_ref[g]
        k = jnp.dot(x, wk_ref[g], preferred_element_type=jnp.float32) + bk_ref[g]
        v = jnp.dot(x, wv_ref[g], preferred_element_type=jnp.float32) + bv_ref[g]
        q = q.reshape(bb, s, gw).astype(mxu_dtype)
        k = k.reshape(bb, s, gw).astype(mxu_dtype)
        v = v.reshape(bb, s, gw).astype(mxu_dtype)

        ctx_heads = []
        for i in range(heads_per_group):     # static: lane slices must be static
            sl = slice(i * head_dim, (i + 1) * head_dim)
            qh, kh, vh = q[..., sl], k[..., sl], v[..., sl]
            # q @ k^T: contract last dims, no transposed K materialised.
            scores = jnp.einsum("bqd,bkd->bqk", qh, kh,
                                preferred_element_type=jnp.float32)  # (Bb,S,S)
            scores = scores + mask           # additive mask, bcast over queries
            # numerically-stable softmax, kept in f32 (v5e has no bf16 VPU/EUP)
            m = jnp.max(scores, axis=-1, keepdims=True)
            p = jnp.exp(scores - m)
            denom = jnp.sum(p, axis=-1, keepdims=True)
            r = pl.reciprocal(denom, approx=True)   # EUP seed...
            r = r * (2.0 - denom * r)               # ...+ one Newton step
            probs = (p * r).astype(mxu_dtype)
            # TODO(synk): attention-probs dropout is identity (inference / p==0).
            ctx_heads.append(jnp.einsum("bqk,bkd->bqd", probs, vh,
                                        preferred_element_type=jnp.float32))

        ctx_g = (ctx_heads[0] if heads_per_group == 1
                 else jnp.concatenate(ctx_heads, axis=-1))           # (Bb,S,gw)
        ctx_scr[g] = ctx_g.astype(ctx_scr.dtype)
        return carry

    lax.fori_loop(0, n_groups, group_body, 0)

    # Copy-out: one lane-dense (Bb, S, gw) store per group at a static column
    # offset; head concatenation == torch permute(0,2,1,3) + view.
    for g in range(n_groups):
        out_ref[:, :, g * gw:(g + 1) * gw] = ctx_scr[g]


def bert_self_attention(hidden_states, attention_mask, params, num_heads,
                        *, compute_dtype=jnp.bfloat16):
    """Forward pass of BERTSelfAttention.

    hidden_states : [B, S, H];  attention_mask: [B, 1, 1, S] additive f32.
    params["wq"/"wk"/"wv"]: [H, H] in (in, out) layout (== W.T of nn.Linear);
    params["bq"/"bk"/"bv"]: [H].
    compute_dtype: dtype of MXU operands (bf16 in production, f32 for tight
    verification).  Softmax is f32 either way.  Returns [B, S, H].
    """
    B, S, H = hidden_states.shape
    dh = H // num_heads
    if num_heads * dh != H:
        raise ValueError("hidden_size must be divisible by num_heads")
    if attention_mask.shape != (B, 1, 1, S):
        raise ValueError(
            f"attention_mask must be [B,1,1,S]={(B, 1, 1, S)}, got {attention_mask.shape}")
    out_dtype = hidden_states.dtype

    # Head grouping: widest whole-head slab (<= 256 lanes) dividing num_heads.
    hpg = 1
    for cand in range(1, num_heads + 1):
        if num_heads % cand == 0 and cand * dh <= 256:
            hpg = cand
    gw = hpg * dh
    n_groups = num_heads // hpg

    # Batch blocking: amortise per-grid-step overhead at small S.
    # TODO(synk): on v7x prefer an even grid extent >= 2 so both TensorCores
    # get work; with production S (Bb == 1) that is automatic.
    bb = 1
    for cand in range(1, B + 1):
        if B % cand == 0 and cand * S <= 256:
            bb = cand
    grid = (B // bb,)

    inv_sqrt_dh = 1.0 / math.sqrt(dh)

    def prep_w(w, scale=1.0):
        w = w.astype(jnp.float32) * scale
        w = w.reshape(H, n_groups, gw)               # output columns are head-major
        return jnp.transpose(w, (1, 0, 2)).astype(compute_dtype)   # (nG, H, gw)

    def prep_b(b, scale=1.0):
        return (b.astype(jnp.float32) * scale).reshape(n_groups, 1, gw)

    wq = prep_w(params["wq"], inv_sqrt_dh)           # fold 1/sqrt(dh) into Q proj
    wk = prep_w(params["wk"])
    wv = prep_w(params["wv"])
    bq = prep_b(params["bq"], inv_sqrt_dh)
    bk = prep_b(params["bk"])
    bv = prep_b(params["bv"])

    x = hidden_states.astype(compute_dtype)          # halves x DMA bytes in bf16
    mask = attention_mask.reshape(B, 1, S).astype(jnp.float32)

    kernel = functools.partial(_attn_kernel, num_heads=num_heads, head_dim=dh,
                               heads_per_group=hpg)
    const = lambda b: (0, 0, 0)   # weights/biases: DMA'd once, resident across batch

    out = pl.pallas_call(
        kernel,
        out_shape=jax.ShapeDtypeStruct((B, S, H), out_dtype),
        grid_spec=pltpu.PrefetchScalarGridSpec(
            num_scalar_prefetch=0,
            grid=grid,
            in_specs=[
                pl.BlockSpec((bb, S, H), lambda b: (b, 0, 0)),     # hidden states
                pl.BlockSpec((n_groups, H, gw), const),            # Wq (pre-scaled)
                pl.BlockSpec((n_groups, H, gw), const),            # Wk
                pl.BlockSpec((n_groups, H, gw), const),            # Wv
                pl.BlockSpec((n_groups, 1, gw), const),            # bq (pre-scaled)
                pl.BlockSpec((n_groups, 1, gw), const),            # bk
                pl.BlockSpec((n_groups, 1, gw), const),            # bv
                pl.BlockSpec((bb, 1, S), lambda b: (b, 0, 0)),     # additive mask
            ],
            out_specs=pl.BlockSpec((bb, S, H), lambda b: (b, 0, 0)),
            scratch_shapes=[pltpu.VMEM((n_groups, bb, S, gw), out_dtype)],
        ),
        compiler_params=pltpu.CompilerParams(
            dimension_semantics=("parallel",)),
    )(x, wq, wk, wv, bq, bk, bv, mask)
    return out


def _reference(hidden_states, attention_mask, params, num_heads):
    B, S, H = hidden_states.shape
    dh = H // num_heads

    def tr(x):  # [B, S, H] -> [B, nH, S, dh]
        return x.reshape(B, S, num_heads, dh).transpose(0, 2, 1, 3)

    q = tr(hidden_states @ params["wq"] + params["bq"])
    k = tr(hidden_states @ params["wk"] + params["bk"])
    v = tr(hidden_states @ params["wv"] + params["bv"])
    scores = jnp.einsum("bhqd,bhkd->bhqk", q, k) / math.sqrt(dh)
    scores = scores + attention_mask                # [B,1,1,S] broadcasts
    probs = jax.nn.softmax(scores, axis=-1)
    ctx = jnp.einsum("bhqk,bhkd->bhqd", probs, v)
    return ctx.transpose(0, 2, 1, 3).reshape(B, S, H)


if __name__ == "__main__":
    # config: hidden_size=32, num_attention_heads=4, seq=8, batch=2
    B, S, H, NH = 2, 8, 32, 4

    key = jax.random.PRNGKey(0)
    ks = jax.random.split(key, 7)
    scale = 0.02
    params = {
        # weights stored in (in, out) layout, i.e. already W.T of nn.Linear
        "wq": scale * jax.random.normal(ks[0], (H, H), jnp.float32),
        "wk": scale * jax.random.normal(ks[1], (H, H), jnp.float32),
        "wv": scale * jax.random.normal(ks[2], (H, H), jnp.float32),
        "bq": scale * jax.random.normal(ks[3], (H,), jnp.float32),
        "bk": scale * jax.random.normal(ks[4], (H,), jnp.float32),
        "bv": scale * jax.random.normal(ks[5], (H,), jnp.float32),
    }
    hidden_states = jax.random.normal(ks[6], (B, S, H), jnp.float32)
    # additive mask: last 2 key positions of batch 1 masked out
    pad = jnp.zeros((B, S), jnp.float32).at[1, -2:].set(-10000.0)
    attention_mask = pad.reshape(B, 1, 1, S)

    ref = _reference(hidden_states, attention_mask, params, NH)

    # Production path: bf16 MXU operands, f32 softmax.  Tolerance bounds bf16
    # operand rounding (~1e-3 abs at these scales); structural bugs are O(1e-1).
    out = bert_self_attention(hidden_states, attention_mask, params, NH)
    out = jax.block_until_ready(out)
    assert out.shape == (B, S, H)
    assert jnp.allclose(out, ref, atol=2e-2, rtol=2e-2), "bf16 kernel mismatch"

    # Verification path: f32 MXU operands -> tight check of indexing/math.
    out_f32 = bert_self_attention(hidden_states, attention_mask, params, NH,
                                  compute_dtype=jnp.float32)
    out_f32 = jax.block_until_ready(out_f32)
    assert jnp.allclose(out_f32, ref, atol=1e-4, rtol=1e-4), "f32 kernel mismatch"

    print("KERNEL_OK")
</pallas_src>

<mosaic_0001>
module attributes {stable_mosaic.version = 11 : i64} {
  func.func @_attn_kernel(%arg0: i32, %arg1: memref<2x8x32xbf16, #tpu.memory_space<vmem>>, %arg2: memref<1x32x32xbf16, #tpu.memory_space<vmem>>, %arg3: memref<1x32x32xbf16, #tpu.memory_space<vmem>>, %arg4: memref<1x32x32xbf16, #tpu.memory_space<vmem>>, %arg5: memref<1x1x32xf32, #tpu.memory_space<vmem>>, %arg6: memref<1x1x32xf32, #tpu.memory_space<vmem>>, %arg7: memref<1x1x32xf32, #tpu.memory_space<vmem>>, %arg8: memref<2x1x8xf32, #tpu.memory_space<vmem>>, %arg9: memref<2x8x32xf32, #tpu.memory_space<vmem>>, %arg10: memref<1x2x8x32xf32, #tpu.memory_space<vmem>>) attributes {dimension_semantics = [#tpu.dimension_semantics<parallel>], iteration_bounds = array<i64: 1>, scalar_prefetch = 0 : i64, scratch_operands = 1 : i64, tpu.core_type = #tpu.core_type<tc>, window_params = [{transform_indices = @transform_0, window_bounds = array<i64: 2, 8, 32>}, {pipeline_mode = #tpu.pipeline_mode<synchronous>, transform_indices = @transform_1, window_bounds = array<i64: 1, 32, 32>}, {pipeline_mode = #tpu.pipeline_mode<synchronous>, transform_indices = @transform_2, window_bounds = array<i64: 1, 32, 32>}, {pipeline_mode = #tpu.pipeline_mode<synchronous>, transform_indices = @transform_3, window_bounds = array<i64: 1, 32, 32>}, {pipeline_mode = #tpu.pipeline_mode<synchronous>, transform_indices = @transform_4, window_bounds = array<i64: 1, 1, 32>}, {pipeline_mode = #tpu.pipeline_mode<synchronous>, transform_indices = @transform_5, window_bounds = array<i64: 1, 1, 32>}, {pipeline_mode = #tpu.pipeline_mode<synchronous>, transform_indices = @transform_6, window_bounds = array<i64: 1, 1, 32>}, {transform_indices = @transform_7, window_bounds = array<i64: 2, 1, 8>}, {transform_indices = @transform_8, window_bounds = array<i64: 2, 8, 32>}]} {
    %c0 = arith.constant 0 : index
    %c0_0 = arith.constant 0 : index
    %c0_1 = arith.constant 0 : index
    %0 = vector.load %arg1[%c0, %c0_0, %c0_1] : memref<2x8x32xbf16, #tpu.memory_space<vmem>>, vector<2x8x32xbf16>
    %1 = vector.shape_cast %0 : vector<2x8x32xbf16> to vector<16x32xbf16>
    %c0_2 = arith.constant 0 : index
    %c0_3 = arith.constant 0 : index
    %c0_4 = arith.constant 0 : index
    %2 = vector.load %arg8[%c0_2, %c0_3, %c0_4] : memref<2x1x8xf32, #tpu.memory_space<vmem>>, vector<2x1x8xf32>
    %c0_i32 = arith.constant 0 : i32
    %3 = arith.index_cast %c0_i32 : i32 to index
    %c0_5 = arith.constant 0 : index
    %c0_6 = arith.constant 0 : index
    %4 = vector.load %arg2[%3, %c0_5, %c0_6] : memref<1x32x32xbf16, #tpu.memory_space<vmem>>, vector<1x32x32xbf16>
    %5 = vector.shape_cast %4 : vector<1x32x32xbf16> to vector<32x32xbf16>
    %cst = arith.constant dense<0.000000e+00> : vector<16x32xf32>
    %6 = tpu.matmul %1, %5, %cst {dimension_numbers = #tpu.dot_dimension_numbers<[1], [0], [0], [1], [0, 0, 1, 1], [], []>} : vector<16x32xbf16>, vector<32x32xbf16>, vector<16x32xf32> -> vector<16x32xf32>
    %7 = arith.index_cast %c0_i32 : i32 to index
    %c0_7 = arith.constant 0 : index
    %c0_8 = arith.constant 0 : index
    %8 = vector.load %arg5[%7, %c0_7, %c0_8] : memref<1x1x32xf32, #tpu.memory_space<vmem>>, vector<1x1x32xf32>
    %9 = vector.shape_cast %8 : vector<1x1x32xf32> to vector<1x32xf32>
    %10 = vector.broadcast %9 : vector<1x32xf32> to vector<16x32xf32>
    %11 = arith.addf %6, %10 : vector<16x32xf32>
    %12 = arith.index_cast %c0_i32 : i32 to index
    %c0_9 = arith.constant 0 : index
    %c0_10 = arith.constant 0 : index
    %13 = vector.load %arg3[%12, %c0_9, %c0_10] : memref<1x32x32xbf16, #tpu.memory_space<vmem>>, vector<1x32x32xbf16>
    %14 = vector.shape_cast %13 : vector<1x32x32xbf16> to vector<32x32xbf16>
    %cst_11 = arith.constant dense<0.000000e+00> : vector<16x32xf32>
    %15 = tpu.matmul %1, %14, %cst_11 {dimension_numbers = #tpu.dot_dimension_numbers<[1], [0], [0], [1], [0, 0, 1, 1], [], []>} : vector<16x32xbf16>, vector<32x32xbf16>, vector<16x32xf32> -> vector<16x32xf32>
    %16 = arith.index_cast %c0_i32 : i32 to index
    %c0_12 = arith.constant 0 : index
    %c0_13 = arith.constant 0 : index
    %17 = vector.load %arg6[%16, %c0_12, %c0_13] : memref<1x1x32xf32, #tpu.memory_space<vmem>>, vector<1x1x32xf32>
    %18 = vector.shape_cast %17 : vector<1x1x32xf32> to vector<1x32xf32>
    %19 = vector.broadcast %18 : vector<1x32xf32> to vector<16x32xf32>
    %20 = arith.addf %15, %19 : vector<16x32xf32>
    %21 = arith.index_cast %c0_i32 : i32 to index
    %c0_14 = arith.constant 0 : index
    %c0_15 = arith.constant 0 : index
    %22 = vector.load %arg4[%21, %c0_14, %c0_15] : memref<1x32x32xbf16, #tpu.memory_space<vmem>>, vector<1x32x32xbf16>
    %23 = vector.shape_cast %22 : vector<1x32x32xbf16> to vector<32x32xbf16>
    %cst_16 = arith.constant dense<0.000000e+00> : vector<16x32xf32>
    %24 = tpu.matmul %1, %23, %cst_16 {dimension_numbers = #tpu.dot_dimension_numbers<[1], [0], [0], [1], [0, 0, 1, 1], [], []>} : vector<16x32xbf16>, vector<32x32xbf16>, vector<16x32xf32> -> vector<16x32xf32>
    %25 = arith.index_cast %c0_i32 : i32 to index
    %c0_17 = arith.constant 0 : index
    %c0_18 = arith.constant 0 : index
    %26 = vector.load %arg7[%25, %c0_17, %c0_18] : memref<1x1x32xf32, #tpu.memory_space<vmem>>, vector<1x1x32xf32>
    %27 = vector.shape_cast %26 : vector<1x1x32xf32> to vector<1x32xf32>
    %28 = vector.broadcast %27 : vector<1x32xf32> to vector<16x32xf32>
    %29 = arith.addf %24, %28 : vector<16x32xf32>
    %30 = vector.shape_cast %11 : vector<16x32xf32> to vector<2x8x32xf32>
    %31 = arith.truncf %30 : vector<2x8x32xf32> to vector<2x8x32xbf16>
    %32 = vector.shape_cast %20 : vector<16x32xf32> to vector<2x8x32xf32>
    %33 = arith.truncf %32 : vector<2x8x32xf32> to vector<2x8x32xbf16>
    %34 = vector.shape_cast %29 : vector<16x32xf32> to vector<2x8x32xf32>
    %35 = arith.truncf %34 : vector<2x8x32xf32> to vector<2x8x32xbf16>
    %36 = vector.extract_strided_slice %31 {offsets = [0, 0, 0], sizes = [2, 8, 8], strides = [1, 1, 1]} : vector<2x8x32xbf16> to vector<2x8x8xbf16>
    %37 = vector.extract_strided_slice %33 {offsets = [0, 0, 0], sizes = [2, 8, 8], strides = [1, 1, 1]} : vector<2x8x32xbf16> to vector<2x8x8xbf16>
    %38 = vector.extract_strided_slice %35 {offsets = [0, 0, 0], sizes = [2, 8, 8], strides = [1, 1, 1]} : vector<2x8x32xbf16> to vector<2x8x8xbf16>
    "tpu.trace_start"() <{level = 10 : i32, message = "bqd,bkd->bqk"}> : () -> ()
    %cst_19 = arith.constant dense<0.000000e+00> : vector<2x8x8xf32>
    %39 = tpu.matmul %36, %37, %cst_19 {dimension_numbers = #tpu.dot_dimension_numbers<[2], [2], [1], [1], [0, 0, 0, 1, 1, 1], [0], [0]>} : vector<2x8x8xbf16>, vector<2x8x8xbf16>, vector<2x8x8xf32> -> vector<2x8x8xf32>
    "tpu.trace_stop"() : () -> ()
    %40 = vector.broadcast %2 : vector<2x1x8xf32> to vector<2x8x8xf32>
    %41 = arith.addf %39, %40 : vector<2x8x8xf32>
    %cst_20 = arith.constant dense<0xFF800000> : vector<2x8xf32>
    %42 = vector.multi_reduction <maximumf>, %41, %cst_20 [2] : vector<2x8x8xf32> to vector<2x8xf32>
    %43 = vector.shape_cast %42 : vector<2x8xf32> to vector<2x8x1xf32>
    %44 = vector.broadcast %43 : vector<2x8x1xf32> to vector<2x8x8xf32>
    %45 = arith.subf %41, %44 : vector<2x8x8xf32>
    %46 = math.exp %45 : vector<2x8x8xf32>
    %cst_21 = arith.constant dense<0.000000e+00> : vector<2x8xf32>
    %47 = vector.multi_reduction <add>, %46, %cst_21 [2] : vector<2x8x8xf32> to vector<2x8xf32>
    %48 = vector.shape_cast %47 : vector<2x8xf32> to vector<2x8x1xf32>
    %49 = tpu.reciprocal %48 {approx = true} : vector<2x8x1xf32> -> vector<2x8x1xf32>
    %50 = arith.mulf %48, %49 : vector<2x8x1xf32>
    %cst_22 = arith.constant 2.000000e+00 : f32
    %51 = vector.broadcast %cst_22 : f32 to vector<2x8x1xf32>
    %52 = arith.subf %51, %50 : vector<2x8x1xf32>
    %53 = arith.mulf %49, %52 : vector<2x8x1xf32>
    %54 = vector.broadcast %53 : vector<2x8x1xf32> to vector<2x8x8xf32>
    %55 = arith.mulf %46, %54 : vector<2x8x8xf32>
    %56 = arith.truncf %55 : vector<2x8x8xf32> to vector<2x8x8xbf16>
    "tpu.trace_start"() <{level = 10 : i32, message = "bqk,bkd->bqd"}> : () -> ()
    %cst_23 = arith.constant dense<0.000000e+00> : vector<2x8x8xf32>
    %57 = tpu.matmul %56, %38, %cst_23 {dimension_numbers = #tpu.dot_dimension_numbers<[2], [1], [1], [2], [0, 0, 0, 1, 1, 2], [0], [0]>} : vector<2x8x8xbf16>, vector<2x8x8xbf16>, vector<2x8x8xf32> -> vector<2x8x8xf32>
    "tpu.trace_stop"() : () -> ()
    %58 = vector.extract_strided_slice %31 {offsets = [0, 0, 8], sizes = [2, 8, 8], strides = [1, 1, 1]} : vector<2x8x32xbf16> to vector<2x8x8xbf16>
    %59 = vector.extract_strided_slice %33 {offsets = [0, 0, 8], sizes = [2, 8, 8], strides = [1, 1, 1]} : vector<2x8x32xbf16> to vector<2x8x8xbf16>
    %60 = vector.extract_strided_slice %35 {offsets = [0, 0, 8], sizes = [2, 8, 8], strides = [1, 1, 1]} : vector<2x8x32xbf16> to vector<2x8x8xbf16>
    "tpu.trace_start"() <{level = 10 : i32, message = "bqd,bkd->bqk"}> : () -> ()
    %cst_24 = arith.constant dense<0.000000e+00> : vector<2x8x8xf32>
    %61 = tpu.matmul %58, %59, %cst_24 {dimension_numbers = #tpu.dot_dimension_numbers<[2], [2], [1], [1], [0, 0, 0, 1, 1, 1], [0], [0]>} : vector<2x8x8xbf16>, vector<2x8x8xbf16>, vector<2x8x8xf32> -> vector<2x8x8xf32>
    "tpu.trace_stop"() : () -> ()
    %62 = vector.broadcast %2 : vector<2x1x8xf32> to vector<2x8x8xf32>
    %63 = arith.addf %61, %62 : vector<2x8x8xf32>
    %cst_25 = arith.constant dense<0xFF800000> : vector<2x8xf32>
    %64 = vector.multi_reduction <maximumf>, %63, %cst_25 [2] : vector<2x8x8xf32> to vector<2x8xf32>
    %65 = vector.shape_cast %64 : vector<2x8xf32> to vector<2x8x1xf32>
    %66 = vector.broadcast %65 : vector<2x8x1xf32> to vector<2x8x8xf32>
    %67 = arith.subf %63, %66 : vector<2x8x8xf32>
    %68 = math.exp %67 : vector<2x8x8xf32>
    %cst_26 = arith.constant dense<0.000000e+00> : vector<2x8xf32>
    %69 = vector.multi_reduction <add>, %68, %cst_26 [2] : vector<2x8x8xf32> to vector<2x8xf32>
    %70 = vector.shape_cast %69 : vector<2x8xf32> to vector<2x8x1xf32>
    %71 = tpu.reciprocal %70 {approx = true} : vector<2x8x1xf32> -> vector<2x8x1xf32>
    %72 = arith.mulf %70, %71 : vector<2x8x1xf32>
    %cst_27 = arith.constant 2.000000e+00 : f32
    %73 = vector.broadcast %cst_27 : f32 to vector<2x8x1xf32>
    %74 = arith.subf %73, %72 : vector<2x8x1xf32>
    %75 = arith.mulf %71, %74 : vector<2x8x1xf32>
    %76 = vector.broadcast %75 : vector<2x8x1xf32> to vector<2x8x8xf32>
    %77 = arith.mulf %68, %76 : vector<2x8x8xf32>
    %78 = arith.truncf %77 : vector<2x8x8xf32> to vector<2x8x8xbf16>
    "tpu.trace_start"() <{level = 10 : i32, message = "bqk,bkd->bqd"}> : () -> ()
    %cst_28 = arith.constant dense<0.000000e+00> : vector<2x8x8xf32>
    %79 = tpu.matmul %78, %60, %cst_28 {dimension_numbers = #tpu.dot_dimension_numbers<[2], [1], [1], [2], [0, 0, 0, 1, 1, 2], [0], [0]>} : vector<2x8x8xbf16>, vector<2x8x8xbf16>, vector<2x8x8xf32> -> vector<2x8x8xf32>
    "tpu.trace_stop"() : () -> ()
    %80 = vector.extract_strided_slice %31 {offsets = [0, 0, 16], sizes = [2, 8, 8], strides = [1, 1, 1]} : vector<2x8x32xbf16> to vector<2x8x8xbf16>
    %81 = vector.extract_strided_slice %33 {offsets = [0, 0, 16], sizes = [2, 8, 8], strides = [1, 1, 1]} : vector<2x8x32xbf16> to vector<2x8x8xbf16>
    %82 = vector.extract_strided_slice %35 {offsets = [0, 0, 16], sizes = [2, 8, 8], strides = [1, 1, 1]} : vector<2x8x32xbf16> to vector<2x8x8xbf16>
    "tpu.trace_start"() <{level = 10 : i32, message = "bqd,bkd->bqk"}> : () -> ()
    %cst_29 = arith.constant dense<0.000000e+00> : vector<2x8x8xf32>
    %83 = tpu.matmul %80, %81, %cst_29 {dimension_numbers = #tpu.dot_dimension_numbers<[2], [2], [1], [1], [0, 0, 0, 1, 1, 1], [0], [0]>} : vector<2x8x8xbf16>, vector<2x8x8xbf16>, vector<2x8x8xf32> -> vector<2x8x8xf32>
    "tpu.trace_stop"() : () -> ()
    %84 = vector.broadcast %2 : vector<2x1x8xf32> to vector<2x8x8xf32>
    %85 = arith.addf %83, %84 : vector<2x8x8xf32>
    %cst_30 = arith.constant dense<0xFF800000> : vector<2x8xf32>
    %86 = vector.multi_reduction <maximumf>, %85, %cst_30 [2] : vector<2x8x8xf32> to vector<2x8xf32>
    %87 = vector.shape_cast %86 : vector<2x8xf32> to vector<2x8x1xf32>
    %88 = vector.broadcast %87 : vector<2x8x1xf32> to vector<2x8x8xf32>
    %89 = arith.subf %85, %88 : vector<2x8x8xf32>
    %90 = math.exp %89 : vector<2x8x8xf32>
    %cst_31 = arith.constant dense<0.000000e+00> : vector<2x8xf32>
    %91 = vector.multi_reduction <add>, %90, %cst_31 [2] : vector<2x8x8xf32> to vector<2x8xf32>
    %92 = vector.shape_cast %91 : vector<2x8xf32> to vector<2x8x1xf32>
    %93 = tpu.reciprocal %92 {approx = true} : vector<2x8x1xf32> -> vector<2x8x1xf32>
    %94 = arith.mulf %92, %93 : vector<2x8x1xf32>
    %cst_32 = arith.constant 2.000000e+00 : f32
    %95 = vector.broadcast %cst_32 : f32 to vector<2x8x1xf32>
    %96 = arith.subf %95, %94 : vector<2x8x1xf32>
    %97 = arith.mulf %93, %96 : vector<2x8x1xf32>
    %98 = vector.broadcast %97 : vector<2x8x1xf32> to vector<2x8x8xf32>
    %99 = arith.mulf %90, %98 : vector<2x8x8xf32>
    %100 = arith.truncf %99 : vector<2x8x8xf32> to vector<2x8x8xbf16>
    "tpu.trace_start"() <{level = 10 : i32, message = "bqk,bkd->bqd"}> : () -> ()
    %cst_33 = arith.constant dense<0.000000e+00> : vector<2x8x8xf32>
    %101 = tpu.matmul %100, %82, %cst_33 {dimension_numbers = #tpu.dot_dimension_numbers<[2], [1], [1], [2], [0, 0, 0, 1, 1, 2], [0], [0]>} : vector<2x8x8xbf16>, vector<2x8x8xbf16>, vector<2x8x8xf32> -> vector<2x8x8xf32>
    "tpu.trace_stop"() : () -> ()
    %102 = vector.extract_strided_slice %31 {offsets = [0, 0, 24], sizes = [2, 8, 8], strides = [1, 1, 1]} : vector<2x8x32xbf16> to vector<2x8x8xbf16>
    %103 = vector.extract_strided_slice %33 {offsets = [0, 0, 24], sizes = [2, 8, 8], strides = [1, 1, 1]} : vector<2x8x32xbf16> to vector<2x8x8xbf16>
    %104 = vector.extract_strided_slice %35 {offsets = [0, 0, 24], sizes = [2, 8, 8], strides = [1, 1, 1]} : vector<2x8x32xbf16> to vector<2x8x8xbf16>
    "tpu.trace_start"() <{level = 10 : i32, message = "bqd,bkd->bqk"}> : () -> ()
    %cst_34 = arith.constant dense<0.000000e+00> : vector<2x8x8xf32>
    %105 = tpu.matmul %102, %103, %cst_34 {dimension_numbers = #tpu.dot_dimension_numbers<[2], [2], [1], [1], [0, 0, 0, 1, 1, 1], [0], [0]>} : vector<2x8x8xbf16>, vector<2x8x8xbf16>, vector<2x8x8xf32> -> vector<2x8x8xf32>
    "tpu.trace_stop"() : () -> ()
    %106 = vector.broadcast %2 : vector<2x1x8xf32> to vector<2x8x8xf32>
    %107 = arith.addf %105, %106 : vector<2x8x8xf32>
    %cst_35 = arith.constant dense<0xFF800000> : vector<2x8xf32>
    %108 = vector.multi_reduction <maximumf>, %107, %cst_35 [2] : vector<2x8x8xf32> to vector<2x8xf32>
    %109 = vector.shape_cast %108 : vector<2x8xf32> to vector<2x8x1xf32>
    %110 = vector.broadcast %109 : vector<2x8x1xf32> to vector<2x8x8xf32>
    %111 = arith.subf %107, %110 : vector<2x8x8xf32>
    %112 = math.exp %111 : vector<2x8x8xf32>
    %cst_36 = arith.constant dense<0.000000e+00> : vector<2x8xf32>
    %113 = vector.multi_reduction <add>, %112, %cst_36 [2] : vector<2x8x8xf32> to vector<2x8xf32>
    %114 = vector.shape_cast %113 : vector<2x8xf32> to vector<2x8x1xf32>
    %115 = tpu.reciprocal %114 {approx = true} : vector<2x8x1xf32> -> vector<2x8x1xf32>
    %116 = arith.mulf %114, %115 : vector<2x8x1xf32>
    %cst_37 = arith.constant 2.000000e+00 : f32
    %117 = vector.broadcast %cst_37 : f32 to vector<2x8x1xf32>
    %118 = arith.subf %117, %116 : vector<2x8x1xf32>
    %119 = arith.mulf %115, %118 : vector<2x8x1xf32>
    %120 = vector.broadcast %119 : vector<2x8x1xf32> to vector<2x8x8xf32>
    %121 = arith.mulf %112, %120 : vector<2x8x8xf32>
    %122 = arith.truncf %121 : vector<2x8x8xf32> to vector<2x8x8xbf16>
    "tpu.trace_start"() <{level = 10 : i32, message = "bqk,bkd->bqd"}> : () -> ()
    %cst_38 = arith.constant dense<0.000000e+00> : vector<2x8x8xf32>
    %123 = tpu.matmul %122, %104, %cst_38 {dimension_numbers = #tpu.dot_dimension_numbers<[2], [1], [1], [2], [0, 0, 0, 1, 1, 2], [0], [0]>} : vector<2x8x8xbf16>, vector<2x8x8xbf16>, vector<2x8x8xf32> -> vector<2x8x8xf32>
    "tpu.trace_stop"() : () -> ()
    %124 = tpu.concatenate %57, %79, %101, %123 in 2 : vector<2x8x8xf32>, vector<2x8x8xf32>, vector<2x8x8xf32>, vector<2x8x8xf32> -> vector<2x8x32xf32>
    %125 = arith.index_cast %c0_i32 : i32 to index
    %c0_39 = arith.constant 0 : index
    %c0_40 = arith.constant 0 : index
    %c0_41 = arith.constant 0 : index
    %126 = vector.load %arg10[%125, %c0_39, %c0_40, %c0_41] : memref<1x2x8x32xf32, #tpu.memory_space<vmem>>, vector<1x2x8x32xf32>
    %127 = vector.shape_cast %126 : vector<1x2x8x32xf32> to vector<2x8x32xf32>
    %128 = vector.shape_cast %124 : vector<2x8x32xf32> to vector<1x2x8x32xf32>
    tpu.vector_store %arg10[%125, %c0_39, %c0_40, %c0_41], %128 {strides = array<i32>} : memref<1x2x8x32xf32, #tpu.memory_space<vmem>>, vector<1x2x8x32xf32>,
    %c1_i32 = arith.constant 1 : i32
    %c0_42 = arith.constant 0 : index
    %c0_43 = arith.constant 0 : index
    %c0_44 = arith.constant 0 : index
    %c0_45 = arith.constant 0 : index
    %129 = vector.load %arg10[%c0_42, %c0_43, %c0_44, %c0_45] : memref<1x2x8x32xf32, #tpu.memory_space<vmem>>, vector<1x2x8x32xf32>
    %130 = vector.shape_cast %129 : vector<1x2x8x32xf32> to vector<2x8x32xf32>
    %c0_46 = arith.constant 0 : index
    %c0_47 = arith.constant 0 : index
    %c0_48 = arith.constant 0 : index
    %131 = vector.load %arg9[%c0_46, %c0_47, %c0_48] : memref<2x8x32xf32, #tpu.memory_space<vmem>>, vector<2x8x32xf32>
    tpu.vector_store %arg9[%c0_46, %c0_47, %c0_48], %130 {strides = array<i32>} : memref<2x8x32xf32, #tpu.memory_space<vmem>>, vector<2x8x32xf32>,
    return
  }
  func.func @transform_0(%arg0: i32) -> (i32, i32, i32) {
    %c0_i32 = arith.constant 0 : i32
    %c0_i32_0 = arith.constant 0 : i32
    %c0_i32_1 = arith.constant 0 : i32
    return %arg0, %c0_i32, %c0_i32_0 : i32, i32, i32
  }
  func.func @transform_1(%arg0: i32) -> (i32, i32, i32) {
    %c0_i32 = arith.constant 0 : i32
    %c0_i32_0 = arith.constant 0 : i32
    %c0_i32_1 = arith.constant 0 : i32
    %c0_i32_2 = arith.constant 0 : i32
    return %c0_i32, %c0_i32_0, %c0_i32_1 : i32, i32, i32
  }
  func.func @transform_2(%arg0: i32) -> (i32, i32, i32) {
    %c0_i32 = arith.constant 0 : i32
    %c0_i32_0 = arith.constant 0 : i32
    %c0_i32_1 = arith.constant 0 : i32
    %c0_i32_2 = arith.constant 0 : i32
    return %c0_i32, %c0_i32_0, %c0_i32_1 : i32, i32, i32
  }
  func.func @transform_3(%arg0: i32) -> (i32, i32, i32) {
    %c0_i32 = arith.constant 0 : i32
    %c0_i32_0 = arith.constant 0 : i32
    %c0_i32_1 = arith.constant 0 : i32
    %c0_i32_2 = arith.constant 0 : i32
    return %c0_i32, %c0_i32_0, %c0_i32_1 : i32, i32, i32
  }
  func.func @transform_4(%arg0: i32) -> (i32, i32, i32) {
    %c0_i32 = arith.constant 0 : i32
    %c0_i32_0 = arith.constant 0 : i32
    %c0_i32_1 = arith.constant 0 : i32
    %c0_i32_2 = arith.constant 0 : i32
    return %c0_i32, %c0_i32_0, %c0_i32_1 : i32, i32, i32
  }
  func.func @transform_5(%arg0: i32) -> (i32, i32, i32) {
    %c0_i32 = arith.constant 0 : i32
    %c0_i32_0 = arith.constant 0 : i32
    %c0_i32_1 = arith.constant 0 : i32
    %c0_i32_2 = arith.constant 0 : i32
    return %c0_i32, %c0_i32_0, %c0_i32_1 : i32, i32, i32
  }
  func.func @transform_6(%arg0: i32) -> (i32, i32, i32) {
    %c0_i32 = arith.constant 0 : i32
    %c0_i32_0 = arith.constant 0 : i32
    %c0_i32_1 = arith.constant 0 : i32
    %c0_i32_2 = arith.constant 0 : i32
    return %c0_i32, %c0_i32_0, %c0_i32_1 : i32, i32, i32
  }
  func.func @transform_7(%arg0: i32) -> (i32, i32, i32) {
    %c0_i32 = arith.constant 0 : i32
    %c0_i32_0 = arith.constant 0 : i32
    %c0_i32_1 = arith.constant 0 : i32
    return %arg0, %c0_i32, %c0_i32_0 : i32, i32, i32
  }
  func.func @transform_8(%arg0: i32) -> (i32, i32, i32) {
    %c0_i32 = arith.constant 0 : i32
    %c0_i32_0 = arith.constant 0 : i32
    %c0_i32_1 = arith.constant 0 : i32
    return %arg0, %c0_i32, %c0_i32_0 : i32, i32, i32
  }
}

</mosaic_0001>

<llo_original>
// kernel: tpu_custom_call.1
$region0: #{tpu_custom_call.1}
  #allocation0 [shape = 'u32[]', space=smem, size = 0x4, offset = 0x4, fixed_abs, tag = 'smem constant byte address 0x4 - core index']
  #allocation1 [shape = 'u32[144,128]{1,0:T(1,128)}', space=vmem, size = 0x12000, scoped, tag = 'internal scratch']
  #allocation2 [shape = 'f32[1,2,8,32]{3,2,1,0:T(8,128)}', space=vmem, size = 0x2000, scoped, tag = 'scratch operand']
  %s0 = inlined_call_operand.hbm [shape: bf16[2,8,32], index: 0, kind: input, shape index: {}]
  %s1 = inlined_call_operand.hbm [shape: bf16[1,32,32], index: 1, kind: input, shape index: {}]
  %s2 = inlined_call_operand.hbm [shape: bf16[1,32,32], index: 2, kind: input, shape index: {}]
  %s3 = inlined_call_operand.hbm [shape: bf16[1,32,32], index: 3, kind: input, shape index: {}]
  %s4 = inlined_call_operand.vmem [shape: f32[1,1,32], index: 4, kind: input, shape index: {}]
  %s5 = inlined_call_operand.vmem [shape: f32[1,1,32], index: 5, kind: input, shape index: {}]
  %s6 = inlined_call_operand.vmem [shape: f32[1,1,32], index: 6, kind: input, shape index: {}]
  %s7 = inlined_call_operand.vmem [shape: f32[2,1,8], index: 7, kind: input, shape index: {}]
  %s8 = inlined_call_operand.hbm [shape: f32[2,8,32], index: 8, kind: output, shape index: {}]
  %s9 = sld [smem:[#allocation0]]
  $region58: #{tpu_custom_call.1} parent=0
    _
  %s11 = ssub.s32 1, %s9
  %s12 = scalar_select 0, %s11, %s9
  $region1: #{tpu_custom_call.1} parent=0
    #allocation3 [shape = 'u8[4096]{0}', space=vmem, size = 0x1000, scoped, tag = 'input window, operand 0, single buffered']
    #allocation4 [shape = 's32[1]{0}', space=sflag, size = 0x4, scoped, tag = 'scoped memory for tpu_custom_call.1']
    #allocation5 [shape = 's32[1]{0}', space=sflag, size = 0x4, scoped, tag = 'scoped memory for tpu_custom_call.1']
    #allocation6 [shape = 'u8[8192]{0}', space=vmem, size = 0x2000, scoped, tag = 'input window, operand 1, single buffered']
    #allocation7 [shape = 's32[1]{0}', space=sflag, size = 0x4, scoped, tag = 'scoped memory for tpu_custom_call.1']
    #allocation8 [shape = 'u8[8192]{0}', space=vmem, size = 0x2000, scoped, tag = 'input window, operand 2, single buffered']
    #allocation9 [shape = 'u8[8192]{0}', space=vmem, size = 0x2000, scoped, tag = 'input window, operand 3, single buffered']
    #allocation10 [shape = 's32[1]{0}', space=sflag, size = 0x4, scoped, tag = 'scoped memory for tpu_custom_call.1']
    #allocation11 [shape = 'u8[8192]{0}', space=vmem, size = 0x2000, scoped, tag = 'output window, operand 0, single buffered']
    %13 = vsyncpa [#allocation4], 0
    %14 = vsyncpa [#allocation7], 0
    %15 = vsyncpa [#allocation10], 0
    %16 = vsyncpa [#allocation5], 0
    // Predicated region
    $region2: #{tpu_custom_call.1} parent=1 // pred_check
      _
    $region3: #{tpu_custom_call.1} parent=1 // pred_check_branch
      %18 = sbr.rel (0) target = $region5
    $region4: #{tpu_custom_call.1} parent=1 // pred_region
      %s20 = ssub.s32 128, 128
      %21 = vsyncadd [#allocation4], %s20
      %s22 = sshll.u32 [#allocation3], 4
      %s23 = int_to_ptr.vmem [resolvable:$true] %s22
      %28 = dma.hbm_to_vmem [thread:$0]  %s0, 128, %s23, [#allocation4], 64, 64, 4
    $region5: #{tpu_custom_call.1} parent=1 // pred_fallthru
      _
    // Predicated region
    $region6: #{tpu_custom_call.1} parent=1 // pred_check
      _
    $region7: #{tpu_custom_call.1} parent=1 // pred_check_branch
      %30 = sbr.rel (0) target = $region9
    $region8: #{tpu_custom_call.1} parent=1 // pred_region
      %s32 = ssub.s32 256, 256
      %33 = vsyncadd [#allocation7], %s32
      %s34 = sshll.u32 [#allocation6], 4
      %s35 = int_to_ptr.vmem [resolvable:$true] %s34
      %40 = dma.hbm_to_vmem [thread:$0]  %s1, 256, %s35, [#allocation7], 64, 64, 4
    $region9: #{tpu_custom_call.1} parent=1 // pred_fallthru
      _
    // Predicated region
    $region10: #{tpu_custom_call.1} parent=1 // pred_check
      _
    $region11: #{tpu_custom_call.1} parent=1 // pred_check_branch
      %42 = sbr.rel (0) target = $region13
    $region12: #{tpu_custom_call.1} parent=1 // pred_region
      %s44 = ssub.s32 256, 256
      %45 = vsyncadd [#allocation7], %s44
      %s46 = sshll.u32 [#allocation8], 4
      %s47 = int_to_ptr.vmem [resolvable:$true] %s46
      %52 = dma.hbm_to_vmem [thread:$0]  %s2, 256, %s47, [#allocation7], 64, 64, 4
    $region13: #{tpu_custom_call.1} parent=1 // pred_fallthru
      _
    // Predicated region
    $region14: #{tpu_custom_call.1} parent=1 // pred_check
      _
    $region15: #{tpu_custom_call.1} parent=1 // pred_check_branch
      %54 = sbr.rel (0) target = $region17
    $region16: #{tpu_custom_call.1} parent=1 // pred_region
      %s56 = ssub.s32 256, 256
      %57 = vsyncadd [#allocation10], %s56
      %s58 = sshll.u32 [#allocation9], 4
      %s59 = int_to_ptr.vmem [resolvable:$true] %s58
      %64 = dma.hbm_to_vmem [thread:$0]  %s3, 256, %s59, [#allocation10], 64, 64, 4
    $region17: #{tpu_custom_call.1} parent=1 // pred_fallthru
      _
    // Predicated region
    $region18: #{tpu_custom_call.1} parent=1 // pred_check
      _
    $region19: #{tpu_custom_call.1} parent=1 // pred_check_branch
      %66 = sbr.rel (0) target = $region21
    $region20: #{tpu_custom_call.1} parent=1 // pred_region
      _
    $region21: #{tpu_custom_call.1} parent=1 // pred_fallthru
      _
    // Predicated region
    $region22: #{tpu_custom_call.1} parent=1 // pred_check
      _
    $region23: #{tpu_custom_call.1} parent=1 // pred_check_branch
      %68 = sbr.rel (0) target = $region25
    $region24: #{tpu_custom_call.1} parent=1 // pred_region
      _
    $region25: #{tpu_custom_call.1} parent=1 // pred_fallthru
      _
    // Predicated region
    $region26: #{tpu_custom_call.1} parent=1 // pred_check
      _
    $region27: #{tpu_custom_call.1} parent=1 // pred_check_branch
      %70 = sbr.rel (0) target = $region29
    $region28: #{tpu_custom_call.1} parent=1 // pred_region
      _
    $region29: #{tpu_custom_call.1} parent=1 // pred_fallthru
      _
    // Predicated region
    $region30: #{tpu_custom_call.1} parent=1 // pred_check
      _
    $region31: #{tpu_custom_call.1} parent=1 // pred_check_branch
      %72 = sbr.rel (0) target = $region33
    $region32: #{tpu_custom_call.1} parent=1 // pred_region
      _
    $region33: #{tpu_custom_call.1} parent=1 // pred_fallthru
      _
    // Predicated region
    $region34: #{tpu_custom_call.1} parent=1 // pred_check
      _
    $region35: #{tpu_custom_call.1} parent=1 // pred_check_branch
      %74 = sbr.rel (0) target = $region37
    $region36: #{tpu_custom_call.1} parent=1 // pred_region
      %75 = dma.done [#allocation4], 128
    $region37: #{tpu_custom_call.1} parent=1 // pred_fallthru
      _
    // Predicated region
    $region38: #{tpu_custom_call.1} parent=1 // pred_check
      _
    $region39: #{tpu_custom_call.1} parent=1 // pred_check_branch
      %77 = sbr.rel (0) target = $region41
    $region40: #{tpu_custom_call.1} parent=1 // pred_region
      %78 = dma.done [#allocation7], 256
    $region41: #{tpu_custom_call.1} parent=1 // pred_fallthru
      _
    // Predicated region
    $region42: #{tpu_custom_call.1} parent=1 // pred_check
      _
    $region43: #{tpu_custom_call.1} parent=1 // pred_check_branch
      %80 = sbr.rel (0) target = $region45
    $region44: #{tpu_custom_call.1} parent=1 // pred_region
      %81 = dma.done [#allocation7], 256
    $region45: #{tpu_custom_call.1} parent=1 // pred_fallthru
      _
    // Predicated region
    $region46: #{tpu_custom_call.1} parent=1 // pred_check
      _
    $region47: #{tpu_custom_call.1} parent=1 // pred_check_branch
      %83 = sbr.rel (0) target = $region49
    $region48: #{tpu_custom_call.1} parent=1 // pred_region
      %84 = dma.done [#allocation10], 256
    $region49: #{tpu_custom_call.1} parent=1 // pred_fallthru
      _
    %v86 = vld [vmem:[#allocation3] sm:$0xf]
    %v87 = vld [vmem:[#allocation3 + $0x4] sm:$0xf]
    %v88 = vld [vmem:[%s7] sm:$0x1]
    %v89 = vld [vmem:[%s7 + $0x1] sm:$0x1]
    %v90 = vld [vmem:[#allocation6] sm:$0xf]
    %v91 = vld [vmem:[#allocation6 + $0x4] sm:$0xf]
    %v92 = vld [vmem:[#allocation6 + $0x8] sm:$0xf]
    %v93 = vld [vmem:[#allocation6 + $0xc] sm:$0xf]
    %v94 = vld [vmem:[%s4] sm:$0x1]
    %v96 = vlaneseq
    %v97 = vshrl.u32 %v96, 7
    %v98 = vsub.s32 0, %v97
    %v99 = vrot.slane %v94, %v98
    %v103 = vunpack.c.l.b16 %v86
    %v104 = vunpack.c.l.b16 %v87
    %v105 = vpack.c.b16 %v104, %v103
    %v110 = vunpack.c.l.b16 %v90
    %v111 = vunpack.c.l.b16 %v91
    %v112 = vunpack.c.l.b16 %v92
    %v113 = vunpack.c.l.b16 %v93
    %v114 = vpack.c.b16 %v111, %v110
    %v115 = vpack.c.b16 %v113, %v112
    %vm118 = vcmask 261120
    %v120 = vsel %vm118, %v105, 0
    %122 = vmatprep.subr.bf16.mxu0 0
    %123 = vmatpush1.bf16.msra.mxu0 %v114
    %124 = vmatprep.subr.bf16.mxu0 0
    %125 = vmatpush1.bf16.msra.mxu0 %v115
    %126 = vmatprep.subr.bf16.mxu0 0
    %127 = vmatpush1.bf16.msra.mxu0 0
    %128 = vmatprep.subr.bf16.mxu0 0
    %129 = vmatpush1.bf16.msra.mxu0 0
    %130 = vmatprep.subr.bf16.mxu0 0
    %131 = vmatpush1.bf16.msra.mxu0 0
    %132 = vmatprep.subr.bf16.mxu0 0
    %133 = vmatpush1.bf16.msra.mxu0 0
    %134 = vmatprep.subr.bf16.mxu0 0
    %135 = vmatpush1.bf16.msra.mxu0 0
    %136 = vmatprep.subr.bf16.mxu0 0
    %137 = vmatpush1.bf16.msra.mxu0 0
    %138 = vmatprep.subr.bf16.mxu0 0
    %139 = vmatpush1.bf16.msra.mxu0 0
    %140 = vmatprep.subr.bf16.mxu0 0
    %141 = vmatpush1.bf16.msra.mxu0 0
    %142 = vmatprep.subr.bf16.mxu0 0
    %143 = vmatpush1.bf16.msra.mxu0 0
    %144 = vmatprep.subr.bf16.mxu0 0
    %145 = vmatpush1.bf16.msra.mxu0 0
    %146 = vmatprep.subr.bf16.mxu0 0
    %147 = vmatpush1.bf16.msra.mxu0 0
    %148 = vmatprep.subr.bf16.mxu0 0
    %149 = vmatpush1.bf16.msra.mxu0 0
    %150 = vmatprep.subr.bf16.mxu0 0
    %151 = vmatpush1.bf16.msra.mxu0 0
    %152 = vmatprep.subr.bf16.mxu0 0
    %153 = vmatpush1.bf16.msra.mxu0 0
    %154 = vmatprep.mubr.bf16.mxu0 0
    %155 = vmatmul.mubr.bf16.gmra.mrb[0].mxu0 %v120
    %v156 = vpop.f32.mrb[0].mxu0
    %v157 = vadd.f32 %v99, %v156
    %v158 = vpop.f32.mrb[0].mxu0
    %v159 = vpop.f32.mrb[0].mxu0
    %v160 = vadd.f32 %v99, %v159
    %v161 = vpop.f32.mrb[0].mxu0
    %162 = vdwg.mxu0
    %v163 = vld [vmem:[#allocation8] sm:$0xf]
    %v164 = vld [vmem:[#allocation8 + $0x4] sm:$0xf]
    %v165 = vld [vmem:[#allocation8 + $0x8] sm:$0xf]
    %v166 = vld [vmem:[#allocation8 + $0xc] sm:$0xf]
    %v167 = vld [vmem:[%s5] sm:$0x1]
    %v169 = vlaneseq
    %v170 = vshrl.u32 %v169, 7
    %v171 = vsub.s32 0, %v170
    %v172 = vrot.slane %v167, %v171
    %v178 = vunpack.c.l.b16 %v163
    %v179 = vunpack.c.l.b16 %v164
    %v180 = vunpack.c.l.b16 %v165
    %v181 = vunpack.c.l.b16 %v166
    %v182 = vpack.c.b16 %v179, %v178
    %v183 = vpack.c.b16 %v181, %v180
    %186 = vmatprep.subr.bf16.mxu0 0
    %187 = vmatpush1.bf16.msra.mxu0 %v182
    %188 = vmatprep.subr.bf16.mxu0 0
    %189 = vmatpush1.bf16.msra.mxu0 %v183
    %190 = vmatprep.subr.bf16.mxu0 0
    %191 = vmatpush1.bf16.msra.mxu0 0
    %192 = vmatprep.subr.bf16.mxu0 0
    %193 = vmatpush1.bf16.msra.mxu0 0
    %194 = vmatprep.subr.bf16.mxu0 0
    %195 = vmatpush1.bf16.msra.mxu0 0
    %196 = vmatprep.subr.bf16.mxu0 0
    %197 = vmatpush1.bf16.msra.mxu0 0
    %198 = vmatprep.subr.bf16.mxu0 0
    %199 = vmatpush1.bf16.msra.mxu0 0
    %200 = vmatprep.subr.bf16.mxu0 0
    %201 = vmatpush1.bf16.msra.mxu0 0
    %202 = vmatprep.subr.bf16.mxu0 0
    %203 = vmatpush1.bf16.msra.mxu0 0
    %204 = vmatprep.subr.bf16.mxu0 0
    %205 = vmatpush1.bf16.msra.mxu0 0
    %206 = vmatprep.subr.bf16.mxu0 0
    %207 = vmatpush1.bf16.msra.mxu0 0
    %208 = vmatprep.subr.bf16.mxu0 0
    %209 = vmatpush1.bf16.msra.mxu0 0
    %210 = vmatprep.subr.bf16.mxu0 0
    %211 = vmatpush1.bf16.msra.mxu0 0
    %212 = vmatprep.subr.bf16.mxu0 0
    %213 = vmatpush1.bf16.msra.mxu0 0
    %214 = vmatprep.subr.bf16.mxu0 0
    %215 = vmatpush1.bf16.msra.mxu0 0
    %216 = vmatprep.subr.bf16.mxu0 0
    %217 = vmatpush1.bf16.msra.mxu0 0
    %218 = vmatprep.mubr.bf16.mxu0 0
    %219 = vmatmul.mubr.bf16.gmra.mrb[0].mxu0 %v120
    %v220 = vpop.f32.mrb[0].mxu0
    %v221 = vadd.f32 %v172, %v220
    %v222 = vpop.f32.mrb[0].mxu0
    %v223 = vpop.f32.mrb[0].mxu0
    %v224 = vadd.f32 %v172, %v223
    %v225 = vpop.f32.mrb[0].mxu0
    %226 = vdwg.mxu0
    %v227 = vld [vmem:[#allocation9] sm:$0xf]
    %v228 = vld [vmem:[#allocation9 + $0x4] sm:$0xf]
    %v229 = vld [vmem:[#allocation9 + $0x8] sm:$0xf]
    %v230 = vld [vmem:[#allocation9 + $0xc] sm:$0xf]
    %v231 = vld [vmem:[%s6] sm:$0x1]
    %v233 = vlaneseq
    %v234 = vshrl.u32 %v233, 7
    %v235 = vsub.s32 0, %v234
    %v236 = vrot.slane %v231, %v235
    %v242 = vunpack.c.l.b16 %v227
    %v243 = vunpack.c.l.b16 %v228
    %v244 = vunpack.c.l.b16 %v229
    %v245 = vunpack.c.l.b16 %v230
    %v246 = vpack.c.b16 %v243, %v242
    %v247 = vpack.c.b16 %v245, %v244
    %250 = vmatprep.subr.bf16.mxu0 0
    %251 = vmatpush1.bf16.msra.mxu0 %v246
    %252 = vmatprep.subr.bf16.mxu0 0
    %253 = vmatpush1.bf16.msra.mxu0 %v247
    %254 = vmatprep.subr.bf16.mxu0 0
    %255 = vmatpush1.bf16.msra.mxu0 0
    %256 = vmatprep.subr.bf16.mxu0 0
    %257 = vmatpush1.bf16.msra.mxu0 0
    %258 = vmatprep.subr.bf16.mxu0 0
    %259 = vmatpush1.bf16.msra.mxu0 0
    %260 = vmatprep.subr.bf16.mxu0 0
    %261 = vmatpush1.bf16.msra.mxu0 0
    %262 = vmatprep.subr.bf16.mxu0 0
    %263 = vmatpush1.bf16.msra.mxu0 0
    %264 = vmatprep.subr.bf16.mxu0 0
    %265 = vmatpush1.bf16.msra.mxu0 0
    %266 = vmatprep.subr.bf16.mxu0 0
    %267 = vmatpush1.bf16.msra.mxu0 0
    %268 = vmatprep.subr.bf16.mxu0 0
    %269 = vmatpush1.bf16.msra.mxu0 0
    %270 = vmatprep.subr.bf16.mxu0 0
    %271 = vmatpush1.bf16.msra.mxu0 0
    %272 = vmatprep.subr.bf16.mxu0 0
    %273 = vmatpush1.bf16.msra.mxu0 0
    %274 = vmatprep.subr.bf16.mxu0 0
    %275 = vmatpush1.bf16.msra.mxu0 0
    %276 = vmatprep.subr.bf16.mxu0 0
    %277 = vmatpush1.bf16.msra.mxu0 0
    %278 = vmatprep.subr.bf16.mxu0 0
    %279 = vmatpush1.bf16.msra.mxu0 0
    %280 = vmatprep.subr.bf16.mxu0 0
    %281 = vmatpush1.bf16.msra.mxu0 0
    %282 = vmatprep.mubr.bf16.mxu0 0
    %283 = vmatmul.mubr.bf16.gmra.mrb[0].mxu0 %v120
    %v284 = vpop.f32.mrb[0].mxu0
    %v285 = vadd.f32 %v236, %v284
    %v286 = vpop.f32.mrb[0].mxu0
    %v287 = vpop.f32.mrb[0].mxu0
    %v288 = vadd.f32 %v236, %v287
    %v289 = vpop.f32.mrb[0].mxu0
    %290 = vdwg.mxu0
    %v291 = vpack.c.bf16 %v157, %v157
    %v292 = vpack.c.bf16 %v160, %v160
    %v293 = vpack.c.bf16 %v221, %v221
    %v294 = vpack.c.bf16 %v224, %v224
    %v295 = vpack.c.bf16 %v285, %v285
    %v296 = vpack.c.bf16 %v288, %v288
    %v299 = vlaneseq
    %v300 = vshrl.u32 %v299, 7
    %v301 = vsub.s32 0, %v300
    %v302 = vrot.slane %v88, %v301
    %v303 = vlaneseq
    %v304 = vshrl.u32 %v303, 7
    %v305 = vsub.s32 0, %v304
    %v306 = vrot.slane %v89, %v305
    %vm309 = vcmask 64512
    %v311 = vsel %vm309, %v291, 0
    %v314 = vsel %vm309, %v293, 0
    %316 = vmatprep.subr.bf16.mxu0 0
    %317 = vmatpush1.bf16.xpose.msra.mxu0 %v314
    %318 = vmatprep.subr.bf16.mxu0 0
    %319 = vmatpush1.bf16.xpose.msra.mxu0 0
    %320 = vmatprep.subr.bf16.mxu0 0
    %321 = vmatpush1.bf16.xpose.msra.mxu0 0
    %322 = vmatprep.subr.bf16.mxu0 0
    %323 = vmatpush1.bf16.xpose.msra.mxu0 0
    %324 = vmatprep.subr.bf16.mxu0 0
    %325 = vmatpush1.bf16.xpose.msra.mxu0 0
    %326 = vmatprep.subr.bf16.mxu0 0
    %327 = vmatpush1.bf16.xpose.msra.mxu0 0
    %328 = vmatprep.subr.bf16.mxu0 0
    %329 = vmatpush1.bf16.xpose.msra.mxu0 0
    %330 = vmatprep.subr.bf16.mxu0 0
    %331 = vmatpush1.bf16.xpose.msra.mxu0 0
    %332 = vmatprep.subr.bf16.mxu0 0
    %333 = vmatpush1.bf16.xpose.msra.mxu0 0
    %334 = vmatprep.subr.bf16.mxu0 0
    %335 = vmatpush1.bf16.xpose.msra.mxu0 0
    %336 = vmatprep.subr.bf16.mxu0 0
    %337 = vmatpush1.bf16.xpose.msra.mxu0 0
    %338 = vmatprep.subr.bf16.mxu0 0
    %339 = vmatpush1.bf16.xpose.msra.mxu0 0
    %340 = vmatprep.subr.bf16.mxu0 0
    %341 = vmatpush1.bf16.xpose.msra.mxu0 0
    %342 = vmatprep.subr.bf16.mxu0 0
    %343 = vmatpush1.bf16.xpose.msra.mxu0 0
    %344 = vmatprep.subr.bf16.mxu0 0
    %345 = vmatpush1.bf16.xpose.msra.mxu0 0
    %346 = vmatprep.subr.bf16.mxu0 0
    %347 = vmatpush1.bf16.xpose.msra.mxu0 0
    %348 = vmatprep.mubr.bf16.mxu0 0
    %349 = vmatmul.mubr.bf16.gmra.mrb[0].mxu0 %v311
    %v350 = vpop.f32.mrb[0].mxu0
    %v351 = vadd.f32 %v302, %v350
    %v352 = vpop.f32.mrb[0].mxu0
    %v353 = vpop.f32.mrb[0].mxu0
    %v354 = vpop.f32.mrb[0].mxu0
    %355 = vdwg.mxu0
    %v357 = vsel %vm309, %v292, 0
    %v360 = vsel %vm309, %v294, 0
    %362 = vmatprep.subr.bf16.mxu0 0
    %363 = vmatpush1.bf16.xpose.msra.mxu0 %v360
    %364 = vmatprep.subr.bf16.mxu0 0
    %365 = vmatpush1.bf16.xpose.msra.mxu0 0
    %366 = vmatprep.subr.bf16.mxu0 0
    %367 = vmatpush1.bf16.xpose.msra.mxu0 0
    %368 = vmatprep.subr.bf16.mxu0 0
    %369 = vmatpush1.bf16.xpose.msra.mxu0 0
    %370 = vmatprep.subr.bf16.mxu0 0
    %371 = vmatpush1.bf16.xpose.msra.mxu0 0
    %372 = vmatprep.subr.bf16.mxu0 0
    %373 = vmatpush1.bf16.xpose.msra.mxu0 0
    %374 = vmatprep.subr.bf16.mxu0 0
    %375 = vmatpush1.bf16.xpose.msra.mxu0 0
    %376 = vmatprep.subr.bf16.mxu0 0
    %377 = vmatpush1.bf16.xpose.msra.mxu0 0
    %378 = vmatprep.subr.bf16.mxu0 0
    %379 = vmatpush1.bf16.xpose.msra.mxu0 0
    %380 = vmatprep.subr.bf16.mxu0 0
    %381 = vmatpush1.bf16.xpose.msra.mxu0 0
    %382 = vmatprep.subr.bf16.mxu0 0
    %383 = vmatpush1.bf16.xpose.msra.mxu0 0
    %384 = vmatprep.subr.bf16.mxu0 0
    %385 = vmatpush1.bf16.xpose.msra.mxu0 0
    %386 = vmatprep.subr.bf16.mxu0 0
    %387 = vmatpush1.bf16.xpose.msra.mxu0 0
    %388 = vmatprep.subr.bf16.mxu0 0
    %389 = vmatpush1.bf16.xpose.msra.mxu0 0
    %390 = vmatprep.subr.bf16.mxu0 0
    %391 = vmatpush1.bf16.xpose.msra.mxu0 0
    %392 = vmatprep.subr.bf16.mxu0 0
    %393 = vmatpush1.bf16.xpose.msra.mxu0 0
    %394 = vmatprep.mubr.bf16.mxu0 0
    %395 = vmatmul.mubr.bf16.gmra.mrb[0].mxu0 %v357
    %v396 = vpop.f32.mrb[0].mxu0
    %v397 = vadd.f32 %v306, %v396
    %v398 = vpop.f32.mrb[0].mxu0
    %v399 = vpop.f32.mrb[0].mxu0
    %v400 = vpop.f32.mrb[0].mxu0
    %401 = vdwg.mxu0
    %v402 = vsel %vm309, %v351, -inf
    %403 = vmax.xlane.f32.xlu0 %v402
    %v404 = vpop.xlane.xlu0 %403
    %v405 = vsel %vm309, %v397, -inf
    %406 = vmax.xlane.f32.xlu0 %v405
    %v407 = vpop.xlane.xlu0 %406
    %v408 = vsub.f32 %v351, %v404
    %v409 = vsub.f32 %v397, %v407
    %v410 = vmul.f32 %v408, 1.442695
    %v411 = vpow.pop %v410
    %v412 = vmul.f32 %v409, 1.442695
    %v413 = vpow.pop %v412
    %v414 = vsel %vm309, %v411, 0.0
    %415 = vadd.xlane.f32.xlu0 %v414
    %v416 = vpop.xlane.xlu0 %415
    %v417 = vsel %vm309, %v413, 0.0
    %418 = vadd.xlane.f32.xlu0 %v417
    %v419 = vpop.xlane.xlu0 %418
    %v420 = vrcp.pop %v416
    %v421 = vrcp.pop %v419
    %v422 = vmul.f32 %v416, %v420
    %v423 = vmul.f32 %v419, %v421
    %v424 = vsub.f32 2.0, %v422
    %v425 = vsub.f32 2.0, %v423
    %v426 = vmul.f32 %v420, %v424
    %v427 = vmul.f32 %v421, %v425
    %v428 = vmul.f32 %v411, %v426
    %v429 = vmul.f32 %v413, %v427
    %v430 = vpack.c.bf16 %v428, %v428
    %v431 = vpack.c.bf16 %v429, %v429
    %v433 = vsel %vm309, %v430, 0
    %vm435 = vcmask 1043456
    %v437 = vsel %vm435, %v295, 0
    %439 = vmatprep.subr.bf16.mxu0 0
    %440 = vmatpush1.bf16.msra.mxu0 %v437
    %441 = vmatprep.subr.bf16.mxu0 0
    %442 = vmatpush1.bf16.msra.mxu0 0
    %443 = vmatprep.subr.bf16.mxu0 0
    %444 = vmatpush1.bf16.msra.mxu0 0
    %445 = vmatprep.subr.bf16.mxu0 0
    %446 = vmatpush1.bf16.msra.mxu0 0
    %447 = vmatprep.subr.bf16.mxu0 0
    %448 = vmatpush1.bf16.msra.mxu0 0
    %449 = vmatprep.subr.bf16.mxu0 0
    %450 = vmatpush1.bf16.msra.mxu0 0
    %451 = vmatprep.subr.bf16.mxu0 0
    %452 = vmatpush1.bf16.msra.mxu0 0
    %453 = vmatprep.subr.bf16.mxu0 0
    %454 = vmatpush1.bf16.msra.mxu0 0
    %455 = vmatprep.subr.bf16.mxu0 0
    %456 = vmatpush1.bf16.msra.mxu0 0
    %457 = vmatprep.subr.bf16.mxu0 0
    %458 = vmatpush1.bf16.msra.mxu0 0
    %459 = vmatprep.subr.bf16.mxu0 0
    %460 = vmatpush1.bf16.msra.mxu0 0
    %461 = vmatprep.subr.bf16.mxu0 0
    %462 = vmatpush1.bf16.msra.mxu0 0
    %463 = vmatprep.subr.bf16.mxu0 0
    %464 = vmatpush1.bf16.msra.mxu0 0
    %465 = vmatprep.subr.bf16.mxu0 0
    %466 = vmatpush1.bf16.msra.mxu0 0
    %467 = vmatprep.subr.bf16.mxu0 0
    %468 = vmatpush1.bf16.msra.mxu0 0
    %469 = vmatprep.subr.bf16.mxu0 0
    %470 = vmatpush1.bf16.msra.mxu0 0
    %471 = vmatprep.mubr.bf16.mxu0 0
    %472 = vmatmul.mubr.bf16.gmra.mrb[0].mxu0 %v433
    %v473 = vpop.f32.mrb[0].mxu0
    %v474 = vadd.f32 0.0, %v473
    %v475 = vpop.f32.mrb[0].mxu0
    %v476 = vpop.f32.mrb[0].mxu0
    %v477 = vpop.f32.mrb[0].mxu0
    %478 = vdwg.mxu0
    %v480 = vsel %vm309, %v431, 0
    %v483 = vsel %vm435, %v296, 0
    %485 = vmatprep.subr.bf16.mxu0 0
    %486 = vmatpush1.bf16.msra.mxu0 %v483
    %487 = vmatprep.subr.bf16.mxu0 0
    %488 = vmatpush1.bf16.msra.mxu0 0
    %489 = vmatprep.subr.bf16.mxu0 0
    %490 = vmatpush1.bf16.msra.mxu0 0
    %491 = vmatprep.subr.bf16.mxu0 0
    %492 = vmatpush1.bf16.msra.mxu0 0
    %493 = vmatprep.subr.bf16.mxu0 0
    %494 = vmatpush1.bf16.msra.mxu0 0
    %495 = vmatprep.subr.bf16.mxu0 0
    %496 = vmatpush1.bf16.msra.mxu0 0
    %497 = vmatprep.subr.bf16.mxu0 0
    %498 = vmatpush1.bf16.msra.mxu0 0
    %499 = vmatprep.subr.bf16.mxu0 0
    %500 = vmatpush1.bf16.msra.mxu0 0
    %501 = vmatprep.subr.bf16.mxu0 0
    %502 = vmatpush1.bf16.msra.mxu0 0
    %503 = vmatprep.subr.bf16.mxu0 0
    %504 = vmatpush1.bf16.msra.mxu0 0
    %505 = vmatprep.subr.bf16.mxu0 0
    %506 = vmatpush1.bf16.msra.mxu0 0
    %507 = vmatprep.subr.bf16.mxu0 0
    %508 = vmatpush1.bf16.msra.mxu0 0
    %509 = vmatprep.subr.bf16.mxu0 0
    %510 = vmatpush1.bf16.msra.mxu0 0
    %511 = vmatprep.subr.bf16.mxu0 0
    %512 = vmatpush1.bf16.msra.mxu0 0
    %513 = vmatprep.subr.bf16.mxu0 0
    %514 = vmatpush1.bf16.msra.mxu0 0
    %515 = vmatprep.subr.bf16.mxu0 0
    %516 = vmatpush1.bf16.msra.mxu0 0
    %517 = vmatprep.mubr.bf16.mxu0 0
    %518 = vmatmul.mubr.bf16.gmra.mrb[0].mxu0 %v480
    %v519 = vpop.f32.mrb[0].mxu0
    %v520 = vadd.f32 0.0, %v519
    %v521 = vpop.f32.mrb[0].mxu0
    %v522 = vpop.f32.mrb[0].mxu0
    %v523 = vpop.f32.mrb[0].mxu0
    %524 = vdwg.mxu0
    %526 = vrot.lane.b32.xlu0 %v291, 120
    %v527 = vpop.permute.xlu0 %526
    %529 = vrot.lane.b32.xlu0 %v293, 120
    %v530 = vpop.permute.xlu0 %529
    %v532 = vsel %vm309, %v527, 0
    %v535 = vsel %vm309, %v530, 0
    %537 = vmatprep.subr.bf16.mxu0 0
    %538 = vmatpush1.bf16.xpose.msra.mxu0 %v535
    %539 = vmatprep.subr.bf16.mxu0 0
    %540 = vmatpush1.bf16.xpose.msra.mxu0 0
    %541 = vmatprep.subr.bf16.mxu0 0
    %542 = vmatpush1.bf16.xpose.msra.mxu0 0
    %543 = vmatprep.subr.bf16.mxu0 0
    %544 = vmatpush1.bf16.xpose.msra.mxu0 0
    %545 = vmatprep.subr.bf16.mxu0 0
    %546 = vmatpush1.bf16.xpose.msra.mxu0 0
    %547 = vmatprep.subr.bf16.mxu0 0
    %548 = vmatpush1.bf16.xpose.msra.mxu0 0
    %549 = vmatprep.subr.bf16.mxu0 0
    %550 = vmatpush1.bf16.xpose.msra.mxu0 0
    %551 = vmatprep.subr.bf16.mxu0 0
    %552 = vmatpush1.bf16.xpose.msra.mxu0 0
    %553 = vmatprep.subr.bf16.mxu0 0
    %554 = vmatpush1.bf16.xpose.msra.mxu0 0
    %555 = vmatprep.subr.bf16.mxu0 0
    %556 = vmatpush1.bf16.xpose.msra.mxu0 0
    %557 = vmatprep.subr.bf16.mxu0 0
    %558 = vmatpush1.bf16.xpose.msra.mxu0 0
    %559 = vmatprep.subr.bf16.mxu0 0
    %560 = vmatpush1.bf16.xpose.msra.mxu0 0
    %561 = vmatprep.subr.bf16.mxu0 0
    %562 = vmatpush1.bf16.xpose.msra.mxu0 0
    %563 = vmatprep.subr.bf16.mxu0 0
    %564 = vmatpush1.bf16.xpose.msra.mxu0 0
    %565 = vmatprep.subr.bf16.mxu0 0
    %566 = vmatpush1.bf16.xpose.msra.mxu0 0
    %567 = vmatprep.subr.bf16.mxu0 0
    %568 = vmatpush1.bf16.xpose.msra.mxu0 0
    %569 = vmatprep.mubr.bf16.mxu0 0
    %570 = vmatmul.mubr.bf16.gmra.mrb[0].mxu0 %v532
    %v571 = vpop.f32.mrb[0].mxu0
    %v572 = vadd.f32 %v302, %v571
    %v573 = vpop.f32.mrb[0].mxu0
    %v574 = vpop.f32.mrb[0].mxu0
    %v575 = vpop.f32.mrb[0].mxu0
    %576 = vdwg.mxu0
    %578 = vrot.lane.b32.xlu0 %v292, 120
    %v579 = vpop.permute.xlu0 %578
    %581 = vrot.lane.b32.xlu0 %v294, 120
    %v582 = vpop.permute.xlu0 %581
    %v584 = vsel %vm309, %v579, 0
    %v587 = vsel %vm309, %v582, 0
    %589 = vmatprep.subr.bf16.mxu0 0
    %590 = vmatpush1.bf16.xpose.msra.mxu0 %v587
    %591 = vmatprep.subr.bf16.mxu0 0
    %592 = vmatpush1.bf16.xpose.msra.mxu0 0
    %593 = vmatprep.subr.bf16.mxu0 0
    %594 = vmatpush1.bf16.xpose.msra.mxu0 0
    %595 = vmatprep.subr.bf16.mxu0 0
    %596 = vmatpush1.bf16.xpose.msra.mxu0 0
    %597 = vmatprep.subr.bf16.mxu0 0
    %598 = vmatpush1.bf16.xpose.msra.mxu0 0
    %599 = vmatprep.subr.bf16.mxu0 0
    %600 = vmatpush1.bf16.xpose.msra.mxu0 0
    %601 = vmatprep.subr.bf16.mxu0 0
    %602 = vmatpush1.bf16.xpose.msra.mxu0 0
    %603 = vmatprep.subr.bf16.mxu0 0
    %604 = vmatpush1.bf16.xpose.msra.mxu0 0
    %605 = vmatprep.subr.bf16.mxu0 0
    %606 = vmatpush1.bf16.xpose.msra.mxu0 0
    %607 = vmatprep.subr.bf16.mxu0 0
    %608 = vmatpush1.bf16.xpose.msra.mxu0 0
    %609 = vmatprep.subr.bf16.mxu0 0
    %610 = vmatpush1.bf16.xpose.msra.mxu0 0
    %611 = vmatprep.subr.bf16.mxu0 0
    %612 = vmatpush1.bf16.xpose.msra.mxu0 0
    %613 = vmatprep.subr.bf16.mxu0 0
    %614 = vmatpush1.bf16.xpose.msra.mxu0 0
    %615 = vmatprep.subr.bf16.mxu0 0
    %616 = vmatpush1.bf16.xpose.msra.mxu0 0
    %617 = vmatprep.subr.bf16.mxu0 0
    %618 = vmatpush1.bf16.xpose.msra.mxu0 0
    %619 = vmatprep.subr.bf16.mxu0 0
    %620 = vmatpush1.bf16.xpose.msra.mxu0 0
    %621 = vmatprep.mubr.bf16.mxu0 0
    %622 = vmatmul.mubr.bf16.gmra.mrb[0].mxu0 %v584
    %v623 = vpop.f32.mrb[0].mxu0
    %v624 = vadd.f32 %v306, %v623
    %v625 = vpop.f32.mrb[0].mxu0
    %v626 = vpop.f32.mrb[0].mxu0
    %v627 = vpop.f32.mrb[0].mxu0
    %628 = vdwg.mxu0
    %v629 = vsel %vm309, %v572, -inf
    %630 = vmax.xlane.f32.xlu0 %v629
    %v631 = vpop.xlane.xlu0 %630
    %v632 = vsel %vm309, %v624, -inf
    %633 = vmax.xlane.f32.xlu0 %v632
    %v634 = vpop.xlane.xlu0 %633
    %v635 = vsub.f32 %v572, %v631
    %v636 = vsub.f32 %v624, %v634
    %v637 = vmul.f32 %v635, 1.442695
    %v638 = vpow.pop %v637
    %v639 = vmul.f32 %v636, 1.442695
    %v640 = vpow.pop %v639
    %v641 = vsel %vm309, %v638, 0.0
    %642 = vadd.xlane.f32.xlu0 %v641
    %v643 = vpop.xlane.xlu0 %642
    %v644 = vsel %vm309, %v640, 0.0
    %645 = vadd.xlane.f32.xlu0 %v644
    %v646 = vpop.xlane.xlu0 %645
    %v647 = vrcp.pop %v643
    %v648 = vrcp.pop %v646
    %v649 = vmul.f32 %v643, %v647
    %v650 = vmul.f32 %v646, %v648
    %v651 = vsub.f32 2.0, %v649
    %v652 = vsub.f32 2.0, %v650
    %v653 = vmul.f32 %v647, %v651
    %v654 = vmul.f32 %v648, %v652
    %v655 = vmul.f32 %v638, %v653
    %v656 = vmul.f32 %v640, %v654
    %v657 = vpack.c.bf16 %v655, %v655
    %v658 = vpack.c.bf16 %v656, %v656
    %660 = vrot.lane.b32.xlu0 %v295, 120
    %v661 = vpop.permute.xlu0 %660
    %v663 = vsel %vm309, %v657, 0
    %v666 = vsel %vm435, %v661, 0
    %668 = vmatprep.subr.bf16.mxu0 0
    %669 = vmatpush1.bf16.msra.mxu0 %v666
    %670 = vmatprep.subr.bf16.mxu0 0
    %671 = vmatpush1.bf16.msra.mxu0 0
    %672 = vmatprep.subr.bf16.mxu0 0
    %673 = vmatpush1.bf16.msra.mxu0 0
    %674 = vmatprep.subr.bf16.mxu0 0
    %675 = vmatpush1.bf16.msra.mxu0 0
    %676 = vmatprep.subr.bf16.mxu0 0
    %677 = vmatpush1.bf16.msra.mxu0 0
    %678 = vmatprep.subr.bf16.mxu0 0
    %679 = vmatpush1.bf16.msra.mxu0 0
    %680 = vmatprep.subr.bf16.mxu0 0
    %681 = vmatpush1.bf16.msra.mxu0 0
    %682 = vmatprep.subr.bf16.mxu0 0
    %683 = vmatpush1.bf16.msra.mxu0 0
    %684 = vmatprep.subr.bf16.mxu0 0
    %685 = vmatpush1.bf16.msra.mxu0 0
    %686 = vmatprep.subr.bf16.mxu0 0
    %687 = vmatpush1.bf16.msra.mxu0 0
    %688 = vmatprep.subr.bf16.mxu0 0
    %689 = vmatpush1.bf16.msra.mxu0 0
    %690 = vmatprep.subr.bf16.mxu0 0
    %691 = vmatpush1.bf16.msra.mxu0 0
    %692 = vmatprep.subr.bf16.mxu0 0
    %693 = vmatpush1.bf16.msra.mxu0 0
    %694 = vmatprep.subr.bf16.mxu0 0
    %695 = vmatpush1.bf16.msra.mxu0 0
    %696 = vmatprep.subr.bf16.mxu0 0
    %697 = vmatpush1.bf16.msra.mxu0 0
    %698 = vmatprep.subr.bf16.mxu0 0
    %699 = vmatpush1.bf16.msra.mxu0 0
    %700 = vmatprep.mubr.bf16.mxu0 0
    %701 = vmatmul.mubr.bf16.gmra.mrb[0].mxu0 %v663
    %v702 = vpop.f32.mrb[0].mxu0
    %v703 = vadd.f32 0.0, %v702
    %v704 = vpop.f32.mrb[0].mxu0
    %v705 = vpop.f32.mrb[0].mxu0
    %v706 = vpop.f32.mrb[0].mxu0
    %707 = vdwg.mxu0
    %709 = vrot.lane.b32.xlu0 %v296, 120
    %v710 = vpop.permute.xlu0 %709
    %v712 = vsel %vm309, %v658, 0
    %v715 = vsel %vm435, %v710, 0
    %717 = vmatprep.subr.bf16.mxu0 0
    %718 = vmatpush1.bf16.msra.mxu0 %v715
    %719 = vmatprep.subr.bf16.mxu0 0
    %720 = vmatpush1.bf16.msra.mxu0 0
    %721 = vmatprep.subr.bf16.mxu0 0
    %722 = vmatpush1.bf16.msra.mxu0 0
    %723 = vmatprep.subr.bf16.mxu0 0
    %724 = vmatpush1.bf16.msra.mxu0 0
    %725 = vmatprep.subr.bf16.mxu0 0
    %726 = vmatpush1.bf16.msra.mxu0 0
    %727 = vmatprep.subr.bf16.mxu0 0
    %728 = vmatpush1.bf16.msra.mxu0 0
    %729 = vmatprep.subr.bf16.mxu0 0
    %730 = vmatpush1.bf16.msra.mxu0 0
    %731 = vmatprep.subr.bf16.mxu0 0
    %732 = vmatpush1.bf16.msra.mxu0 0
    %733 = vmatprep.subr.bf16.mxu0 0
    %734 = vmatpush1.bf16.msra.mxu0 0
    %735 = vmatprep.subr.bf16.mxu0 0
    %736 = vmatpush1.bf16.msra.mxu0 0
    %737 = vmatprep.subr.bf16.mxu0 0
    %738 = vmatpush1.bf16.msra.mxu0 0
    %739 = vmatprep.subr.bf16.mxu0 0
    %740 = vmatpush1.bf16.msra.mxu0 0
    %741 = vmatprep.subr.bf16.mxu0 0
    %742 = vmatpush1.bf16.msra.mxu0 0
    %743 = vmatprep.subr.bf16.mxu0 0
    %744 = vmatpush1.bf16.msra.mxu0 0
    %745 = vmatprep.subr.bf16.mxu0 0
    %746 = vmatpush1.bf16.msra.mxu0 0
    %747 = vmatprep.subr.bf16.mxu0 0
    %748 = vmatpush1.bf16.msra.mxu0 0
    %749 = vmatprep.mubr.bf16.mxu0 0
    %750 = vmatmul.mubr.bf16.gmra.mrb[0].mxu0 %v712
    %v751 = vpop.f32.mrb[0].mxu0
    %v752 = vadd.f32 0.0, %v751
    %v753 = vpop.f32.mrb[0].mxu0
    %v754 = vpop.f32.mrb[0].mxu0
    %v755 = vpop.f32.mrb[0].mxu0
    %756 = vdwg.mxu0
    %757 = vrot.lane.b32.xlu0 %v291, 112
    %v758 = vpop.permute.xlu0 %757
    %759 = vrot.lane.b32.xlu0 %v293, 112
    %v760 = vpop.permute.xlu0 %759
    %v762 = vsel %vm309, %v758, 0
    %v765 = vsel %vm309, %v760, 0
    %767 = vmatprep.subr.bf16.mxu0 0
    %768 = vmatpush1.bf16.xpose.msra.mxu0 %v765
    %769 = vmatprep.subr.bf16.mxu0 0
    %770 = vmatpush1.bf16.xpose.msra.mxu0 0
    %771 = vmatprep.subr.bf16.mxu0 0
    %772 = vmatpush1.bf16.xpose.msra.mxu0 0
    %773 = vmatprep.subr.bf16.mxu0 0
    %774 = vmatpush1.bf16.xpose.msra.mxu0 0
    %775 = vmatprep.subr.bf16.mxu0 0
    %776 = vmatpush1.bf16.xpose.msra.mxu0 0
    %777 = vmatprep.subr.bf16.mxu0 0
    %778 = vmatpush1.bf16.xpose.msra.mxu0 0
    %779 = vmatprep.subr.bf16.mxu0 0
    %780 = vmatpush1.bf16.xpose.msra.mxu0 0
    %781 = vmatprep.subr.bf16.mxu0 0
    %782 = vmatpush1.bf16.xpose.msra.mxu0 0
    %783 = vmatprep.subr.bf16.mxu0 0
    %784 = vmatpush1.bf16.xpose.msra.mxu0 0
    %785 = vmatprep.subr.bf16.mxu0 0
    %786 = vmatpush1.bf16.xpose.msra.mxu0 0
    %787 = vmatprep.subr.bf16.mxu0 0
    %788 = vmatpush1.bf16.xpose.msra.mxu0 0
    %789 = vmatprep.subr.bf16.mxu0 0
    %790 = vmatpush1.bf16.xpose.msra.mxu0 0
    %791 = vmatprep.subr.bf16.mxu0 0
    %792 = vmatpush1.bf16.xpose.msra.mxu0 0
    %793 = vmatprep.subr.bf16.mxu0 0
    %794 = vmatpush1.bf16.xpose.msra.mxu0 0
    %795 = vmatprep.subr.bf16.mxu0 0
    %796 = vmatpush1.bf16.xpose.msra.mxu0 0
    %797 = vmatprep.subr.bf16.mxu0 0
    %798 = vmatpush1.bf16.xpose.msra.mxu0 0
    %799 = vmatprep.mubr.bf16.mxu0 0
    %800 = vmatmul.mubr.bf16.gmra.mrb[0].mxu0 %v762
    %v801 = vpop.f32.mrb[0].mxu0
    %v802 = vadd.f32 %v302, %v801
    %v803 = vpop.f32.mrb[0].mxu0
    %v804 = vpop.f32.mrb[0].mxu0
    %v805 = vpop.f32.mrb[0].mxu0
    %806 = vdwg.mxu0
    %807 = vrot.lane.b32.xlu0 %v292, 112
    %v808 = vpop.permute.xlu0 %807
    %809 = vrot.lane.b32.xlu0 %v294, 112
    %v810 = vpop.permute.xlu0 %809
    %v812 = vsel %vm309, %v808, 0
    %v815 = vsel %vm309, %v810, 0
    %817 = vmatprep.subr.bf16.mxu0 0
    %818 = vmatpush1.bf16.xpose.msra.mxu0 %v815
    %819 = vmatprep.subr.bf16.mxu0 0
    %820 = vmatpush1.bf16.xpose.msra.mxu0 0
    %821 = vmatprep.subr.bf16.mxu0 0
    %822 = vmatpush1.bf16.xpose.msra.mxu0 0
    %823 = vmatprep.subr.bf16.mxu0 0
    %824 = vmatpush1.bf16.xpose.msra.mxu0 0
    %825 = vmatprep.subr.bf16.mxu0 0
    %826 = vmatpush1.bf16.xpose.msra.mxu0 0
    %827 = vmatprep.subr.bf16.mxu0 0
    %828 = vmatpush1.bf16.xpose.msra.mxu0 0
    %829 = vmatprep.subr.bf16.mxu0 0
    %830 = vmatpush1.bf16.xpose.msra.mxu0 0
    %831 = vmatprep.subr.bf16.mxu0 0
    %832 = vmatpush1.bf16.xpose.msra.mxu0 0
    %833 = vmatprep.subr.bf16.mxu0 0
    %834 = vmatpush1.bf16.xpose.msra.mxu0 0
    %835 = vmatprep.subr.bf16.mxu0 0
    %836 = vmatpush1.bf16.xpose.msra.mxu0 0
    %837 = vmatprep.subr.bf16.mxu0 0
    %838 = vmatpush1.bf16.xpose.msra.mxu0 0
    %839 = vmatprep.subr.bf16.mxu0 0
    %840 = vmatpush1.bf16.xpose.msra.mxu0 0
    %841 = vmatprep.subr.bf16.mxu0 0
    %842 = vmatpush1.bf16.xpose.msra.mxu0 0
    %843 = vmatprep.subr.bf16.mxu0 0
    %844 = vmatpush1.bf16.xpose.msra.mxu0 0
    %845 = vmatprep.subr.bf16.mxu0 0
    %846 = vmatpush1.bf16.xpose.msra.mxu0 0
    %847 = vmatprep.subr.bf16.mxu0 0
    %848 = vmatpush1.bf16.xpose.msra.mxu0 0
    %849 = vmatprep.mubr.bf16.mxu0 0
    %850 = vmatmul.mubr.bf16.gmra.mrb[0].mxu0 %v812
    %v851 = vpop.f32.mrb[0].mxu0
    %v852 = vadd.f32 %v306, %v851
    %v853 = vpop.f32.mrb[0].mxu0
    %v854 = vpop.f32.mrb[0].mxu0
    %v855 = vpop.f32.mrb[0].mxu0
    %856 = vdwg.mxu0
    %v857 = vsel %vm309, %v802, -inf
    %858 = vmax.xlane.f32.xlu0 %v857
    %v859 = vpop.xlane.xlu0 %858
    %v860 = vsel %vm309, %v852, -inf
    %861 = vmax.xlane.f32.xlu0 %v860
    %v862 = vpop.xlane.xlu0 %861
    %v863 = vsub.f32 %v802, %v859
    %v864 = vsub.f32 %v852, %v862
    %v865 = vmul.f32 %v863, 1.442695
    %v866 = vpow.pop %v865
    %v867 = vmul.f32 %v864, 1.442695
    %v868 = vpow.pop %v867
    %v869 = vsel %vm309, %v866, 0.0
    %870 = vadd.xlane.f32.xlu0 %v869
    %v871 = vpop.xlane.xlu0 %870
    %v872 = vsel %vm309, %v868, 0.0
    %873 = vadd.xlane.f32.xlu0 %v872
    %v874 = vpop.xlane.xlu0 %873
    %v875 = vrcp.pop %v871
    %v876 = vrcp.pop %v874
    %v877 = vmul.f32 %v871, %v875
    %v878 = vmul.f32 %v874, %v876
    %v879 = vsub.f32 2.0, %v877
    %v880 = vsub.f32 2.0, %v878
    %v881 = vmul.f32 %v875, %v879
    %v882 = vmul.f32 %v876, %v880
    %v883 = vmul.f32 %v866, %v881
    %v884 = vmul.f32 %v868, %v882
    %v885 = vpack.c.bf16 %v883, %v883
    %v886 = vpack.c.bf16 %v884, %v884
    %887 = vrot.lane.b32.xlu0 %v295, 112
    %v888 = vpop.permute.xlu0 %887
    %v890 = vsel %vm309, %v885, 0
    %v893 = vsel %vm435, %v888, 0
    %895 = vmatprep.subr.bf16.mxu0 0
    %896 = vmatpush1.bf16.msra.mxu0 %v893
    %897 = vmatprep.subr.bf16.mxu0 0
    %898 = vmatpush1.bf16.msra.mxu0 0
    %899 = vmatprep.subr.bf16.mxu0 0
    %900 = vmatpush1.bf16.msra.mxu0 0
    %901 = vmatprep.subr.bf16.mxu0 0
    %902 = vmatpush1.bf16.msra.mxu0 0
    %903 = vmatprep.subr.bf16.mxu0 0
    %904 = vmatpush1.bf16.msra.mxu0 0
    %905 = vmatprep.subr.bf16.mxu0 0
    %906 = vmatpush1.bf16.msra.mxu0 0
    %907 = vmatprep.subr.bf16.mxu0 0
    %908 = vmatpush1.bf16.msra.mxu0 0
    %909 = vmatprep.subr.bf16.mxu0 0
    %910 = vmatpush1.bf16.msra.mxu0 0
    %911 = vmatprep.subr.bf16.mxu0 0
    %912 = vmatpush1.bf16.msra.mxu0 0
    %913 = vmatprep.subr.bf16.mxu0 0
    %914 = vmatpush1.bf16.msra.mxu0 0
    %915 = vmatprep.subr.bf16.mxu0 0
    %916 = vmatpush1.bf16.msra.mxu0 0
    %917 = vmatprep.subr.bf16.mxu0 0
    %918 = vmatpush1.bf16.msra.mxu0 0
    %919 = vmatprep.subr.bf16.mxu0 0
    %920 = vmatpush1.bf16.msra.mxu0 0
    %921 = vmatprep.subr.bf16.mxu0 0
    %922 = vmatpush1.bf16.msra.mxu0 0
    %923 = vmatprep.subr.bf16.mxu0 0
    %924 = vmatpush1.bf16.msra.mxu0 0
    %925 = vmatprep.subr.bf16.mxu0 0
    %926 = vmatpush1.bf16.msra.mxu0 0
    %927 = vmatprep.mubr.bf16.mxu0 0
    %928 = vmatmul.mubr.bf16.gmra.mrb[0].mxu0 %v890
    %v929 = vpop.f32.mrb[0].mxu0
    %v930 = vadd.f32 0.0, %v929
    %v931 = vpop.f32.mrb[0].mxu0
    %v932 = vpop.f32.mrb[0].mxu0
    %v933 = vpop.f32.mrb[0].mxu0
    %934 = vdwg.mxu0
    %935 = vrot.lane.b32.xlu0 %v296, 112
    %v936 = vpop.permute.xlu0 %935
    %v938 = vsel %vm309, %v886, 0
    %v941 = vsel %vm435, %v936, 0
    %943 = vmatprep.subr.bf16.mxu0 0
    %944 = vmatpush1.bf16.msra.mxu0 %v941
    %945 = vmatprep.subr.bf16.mxu0 0
    %946 = vmatpush1.bf16.msra.mxu0 0
    %947 = vmatprep.subr.bf16.mxu0 0
    %948 = vmatpush1.bf16.msra.mxu0 0
    %949 = vmatprep.subr.bf16.mxu0 0
    %950 = vmatpush1.bf16.msra.mxu0 0
    %951 = vmatprep.subr.bf16.mxu0 0
    %952 = vmatpush1.bf16.msra.mxu0 0
    %953 = vmatprep.subr.bf16.mxu0 0
    %954 = vmatpush1.bf16.msra.mxu0 0
    %955 = vmatprep.subr.bf16.mxu0 0
    %956 = vmatpush1.bf16.msra.mxu0 0
    %957 = vmatprep.subr.bf16.mxu0 0
    %958 = vmatpush1.bf16.msra.mxu0 0
    %959 = vmatprep.subr.bf16.mxu0 0
    %960 = vmatpush1.bf16.msra.mxu0 0
    %961 = vmatprep.subr.bf16.mxu0 0
    %962 = vmatpush1.bf16.msra.mxu0 0
    %963 = vmatprep.subr.bf16.mxu0 0
    %964 = vmatpush1.bf16.msra.mxu0 0
    %965 = vmatprep.subr.bf16.mxu0 0
    %966 = vmatpush1.bf16.msra.mxu0 0
    %967 = vmatprep.subr.bf16.mxu0 0
    %968 = vmatpush1.bf16.msra.mxu0 0
    %969 = vmatprep.subr.bf16.mxu0 0
    %970 = vmatpush1.bf16.msra.mxu0 0
    %971 = vmatprep.subr.bf16.mxu0 0
    %972 = vmatpush1.bf16.msra.mxu0 0
    %973 = vmatprep.subr.bf16.mxu0 0
    %974 = vmatpush1.bf16.msra.mxu0 0
    %975 = vmatprep.mubr.bf16.mxu0 0
    %976 = vmatmul.mubr.bf16.gmra.mrb[0].mxu0 %v938
    %v977 = vpop.f32.mrb[0].mxu0
    %v978 = vadd.f32 0.0, %v977
    %v979 = vpop.f32.mrb[0].mxu0
    %v980 = vpop.f32.mrb[0].mxu0
    %v981 = vpop.f32.mrb[0].mxu0
    %982 = vdwg.mxu0
    %983 = vrot.lane.b32.xlu0 %v291, 104
    %v984 = vpop.permute.xlu0 %983
    %985 = vrot.lane.b32.xlu0 %v293, 104
    %v986 = vpop.permute.xlu0 %985
    %v988 = vsel %vm309, %v984, 0
    %v991 = vsel %vm309, %v986, 0
    %993 = vmatprep.subr.bf16.mxu0 0
    %994 = vmatpush1.bf16.xpose.msra.mxu0 %v991
    %995 = vmatprep.subr.bf16.mxu0 0
    %996 = vmatpush1.bf16.xpose.msra.mxu0 0
    %997 = vmatprep.subr.bf16.mxu0 0
    %998 = vmatpush1.bf16.xpose.msra.mxu0 0
    %999 = vmatprep.subr.bf16.mxu0 0
    %1000 = vmatpush1.bf16.xpose.msra.mxu0 0
    %1001 = vmatprep.subr.bf16.mxu0 0
    %1002 = vmatpush1.bf16.xpose.msra.mxu0 0
    %1003 = vmatprep.subr.bf16.mxu0 0
    %1004 = vmatpush1.bf16.xpose.msra.mxu0 0
    %1005 = vmatprep.subr.bf16.mxu0 0
    %1006 = vmatpush1.bf16.xpose.msra.mxu0 0
    %1007 = vmatprep.subr.bf16.mxu0 0
    %1008 = vmatpush1.bf16.xpose.msra.mxu0 0
    %1009 = vmatprep.subr.bf16.mxu0 0
    %1010 = vmatpush1.bf16.xpose.msra.mxu0 0
    %1011 = vmatprep.subr.bf16.mxu0 0
    %1012 = vmatpush1.bf16.xpose.msra.mxu0 0
    %1013 = vmatprep.subr.bf16.mxu0 0
    %1014 = vmatpush1.bf16.xpose.msra.mxu0 0
    %1015 = vmatprep.subr.bf16.mxu0 0
    %1016 = vmatpush1.bf16.xpose.msra.mxu0 0
    %1017 = vmatprep.subr.bf16.mxu0 0
    %1018 = vmatpush1.bf16.xpose.msra.mxu0 0
    %1019 = vmatprep.subr.bf16.mxu0 0
    %1020 = vmatpush1.bf16.xpose.msra.mxu0 0
    %1021 = vmatprep.subr.bf16.mxu0 0
    %1022 = vmatpush1.bf16.xpose.msra.mxu0 0
    %1023 = vmatprep.subr.bf16.mxu0 0
    %1024 = vmatpush1.bf16.xpose.msra.mxu0 0
    %1025 = vmatprep.mubr.bf16.mxu0 0
    %1026 = vmatmul.mubr.bf16.gmra.mrb[0].mxu0 %v988
    %v1027 = vpop.f32.mrb[0].mxu0
    %v1028 = vadd.f32 %v302, %v1027
    %v1029 = vpop.f32.mrb[0].mxu0
    %v1030 = vpop.f32.mrb[0].mxu0
    %v1031 = vpop.f32.mrb[0].mxu0
    %1032 = vdwg.mxu0
    %1033 = vrot.lane.b32.xlu0 %v292, 104
    %v1034 = vpop.permute.xlu0 %1033
    %1035 = vrot.lane.b32.xlu0 %v294, 104
    %v1036 = vpop.permute.xlu0 %1035
    %v1038 = vsel %vm309, %v1034, 0
    %v1041 = vsel %vm309, %v1036, 0
    %1043 = vmatprep.subr.bf16.mxu0 0
    %1044 = vmatpush1.bf16.xpose.msra.mxu0 %v1041
    %1045 = vmatprep.subr.bf16.mxu0 0
    %1046 = vmatpush1.bf16.xpose.msra.mxu0 0
    %1047 = vmatprep.subr.bf16.mxu0 0
    %1048 = vmatpush1.bf16.xpose.msra.mxu0 0
    %1049 = vmatprep.subr.bf16.mxu0 0
    %1050 = vmatpush1.bf16.xpose.msra.mxu0 0
    %1051 = vmatprep.subr.bf16.mxu0 0
    %1052 = vmatpush1.bf16.xpose.msra.mxu0 0
    %1053 = vmatprep.subr.bf16.mxu0 0
    %1054 = vmatpush1.bf16.xpose.msra.mxu0 0
    %1055 = vmatprep.subr.bf16.mxu0 0
    %1056 = vmatpush1.bf16.xpose.msra.mxu0 0
    %1057 = vmatprep.subr.bf16.mxu0 0
    %1058 = vmatpush1.bf16.xpose.msra.mxu0 0
    %1059 = vmatprep.subr.bf16.mxu0 0
    %1060 = vmatpush1.bf16.xpose.msra.mxu0 0
    %1061 = vmatprep.subr.bf16.mxu0 0
    %1062 = vmatpush1.bf16.xpose.msra.mxu0 0
    %1063 = vmatprep.subr.bf16.mxu0 0
    %1064 = vmatpush1.bf16.xpose.msra.mxu0 0
    %1065 = vmatprep.subr.bf16.mxu0 0
    %1066 = vmatpush1.bf16.xpose.msra.mxu0 0
    %1067 = vmatprep.subr.bf16.mxu0 0
    %1068 = vmatpush1.bf16.xpose.msra.mxu0 0
    %1069 = vmatprep.subr.bf16.mxu0 0
    %1070 = vmatpush1.bf16.xpose.msra.mxu0 0
    %1071 = vmatprep.subr.bf16.mxu0 0
    %1072 = vmatpush1.bf16.xpose.msra.mxu0 0
    %1073 = vmatprep.subr.bf16.mxu0 0
    %1074 = vmatpush1.bf16.xpose.msra.mxu0 0
    %1075 = vmatprep.mubr.bf16.mxu0 0
    %1076 = vmatmul.mubr.bf16.gmra.mrb[0].mxu0 %v1038
    %v1077 = vpop.f32.mrb[0].mxu0
    %v1078 = vadd.f32 %v306, %v1077
    %v1079 = vpop.f32.mrb[0].mxu0
    %v1080 = vpop.f32.mrb[0].mxu0
    %v1081 = vpop.f32.mrb[0].mxu0
    %1082 = vdwg.mxu0
    %v1083 = vsel %vm309, %v1028, -inf
    %1084 = vmax.xlane.f32.xlu0 %v1083
    %v1085 = vpop.xlane.xlu0 %1084
    %v1086 = vsel %vm309, %v1078, -inf
    %1087 = vmax.xlane.f32.xlu0 %v1086
    %v1088 = vpop.xlane.xlu0 %1087
    %v1089 = vsub.f32 %v1028, %v1085
    %v1090 = vsub.f32 %v1078, %v1088
    %v1091 = vmul.f32 %v1089, 1.442695
    %v1092 = vpow.pop %v1091
    %v1093 = vmul.f32 %v1090, 1.442695
    %v1094 = vpow.pop %v1093
    %v1095 = vsel %vm309, %v1092, 0.0
    %1096 = vadd.xlane.f32.xlu0 %v1095
    %v1097 = vpop.xlane.xlu0 %1096
    %v1098 = vsel %vm309, %v1094, 0.0
    %1099 = vadd.xlane.f32.xlu0 %v1098
    %v1100 = vpop.xlane.xlu0 %1099
    %v1101 = vrcp.pop %v1097
    %v1102 = vrcp.pop %v1100
    %v1103 = vmul.f32 %v1097, %v1101
    %v1104 = vmul.f32 %v1100, %v1102
    %v1105 = vsub.f32 2.0, %v1103
    %v1106 = vsub.f32 2.0, %v1104
    %v1107 = vmul.f32 %v1101, %v1105
    %v1108 = vmul.f32 %v1102, %v1106
    %v1109 = vmul.f32 %v1092, %v1107
    %v1110 = vmul.f32 %v1094, %v1108
    %v1111 = vpack.c.bf16 %v1109, %v1109
    %v1112 = vpack.c.bf16 %v1110, %v1110
    %1113 = vrot.lane.b32.xlu0 %v295, 104
    %v1114 = vpop.permute.xlu0 %1113
    %v1116 = vsel %vm309, %v1111, 0
    %v1119 = vsel %vm435, %v1114, 0
    %1121 = vmatprep.subr.bf16.mxu0 0
    %1122 = vmatpush1.bf16.msra.mxu0 %v1119
    %1123 = vmatprep.subr.bf16.mxu0 0
    %1124 = vmatpush1.bf16.msra.mxu0 0
    %1125 = vmatprep.subr.bf16.mxu0 0
    %1126 = vmatpush1.bf16.msra.mxu0 0
    %1127 = vmatprep.subr.bf16.mxu0 0
    %1128 = vmatpush1.bf16.msra.mxu0 0
    %1129 = vmatprep.subr.bf16.mxu0 0
    %1130 = vmatpush1.bf16.msra.mxu0 0
    %1131 = vmatprep.subr.bf16.mxu0 0
    %1132 = vmatpush1.bf16.msra.mxu0 0
    %1133 = vmatprep.subr.bf16.mxu0 0
    %1134 = vmatpush1.bf16.msra.mxu0 0
    %1135 = vmatprep.subr.bf16.mxu0 0
    %1136 = vmatpush1.bf16.msra.mxu0 0
    %1137 = vmatprep.subr.bf16.mxu0 0
    %1138 = vmatpush1.bf16.msra.mxu0 0
    %1139 = vmatprep.subr.bf16.mxu0 0
    %1140 = vmatpush1.bf16.msra.mxu0 0
    %1141 = vmatprep.subr.bf16.mxu0 0
    %1142 = vmatpush1.bf16.msra.mxu0 0
    %1143 = vmatprep.subr.bf16.mxu0 0
    %1144 = vmatpush1.bf16.msra.mxu0 0
    %1145 = vmatprep.subr.bf16.mxu0 0
    %1146 = vmatpush1.bf16.msra.mxu0 0
    %1147 = vmatprep.subr.bf16.mxu0 0
    %1148 = vmatpush1.bf16.msra.mxu0 0
    %1149 = vmatprep.subr.bf16.mxu0 0
    %1150 = vmatpush1.bf16.msra.mxu0 0
    %1151 = vmatprep.subr.bf16.mxu0 0
    %1152 = vmatpush1.bf16.msra.mxu0 0
    %1153 = vmatprep.mubr.bf16.mxu0 0
    %1154 = vmatmul.mubr.bf16.gmra.mrb[0].mxu0 %v1116
    %v1155 = vpop.f32.mrb[0].mxu0
    %v1156 = vadd.f32 0.0, %v1155
    %v1157 = vpop.f32.mrb[0].mxu0
    %v1158 = vpop.f32.mrb[0].mxu0
    %v1159 = vpop.f32.mrb[0].mxu0
    %1160 = vdwg.mxu0
    %1161 = vrot.lane.b32.xlu0 %v296, 104
    %v1162 = vpop.permute.xlu0 %1161
    %v1164 = vsel %vm309, %v1112, 0
    %v1167 = vsel %vm435, %v1162, 0
    %1169 = vmatprep.subr.bf16.mxu0 0
    %1170 = vmatpush1.bf16.msra.mxu0 %v1167
    %1171 = vmatprep.subr.bf16.mxu0 0
    %1172 = vmatpush1.bf16.msra.mxu0 0
    %1173 = vmatprep.subr.bf16.mxu0 0
    %1174 = vmatpush1.bf16.msra.mxu0 0
    %1175 = vmatprep.subr.bf16.mxu0 0
    %1176 = vmatpush1.bf16.msra.mxu0 0
    %1177 = vmatprep.subr.bf16.mxu0 0
    %1178 = vmatpush1.bf16.msra.mxu0 0
    %1179 = vmatprep.subr.bf16.mxu0 0
    %1180 = vmatpush1.bf16.msra.mxu0 0
    %1181 = vmatprep.subr.bf16.mxu0 0
    %1182 = vmatpush1.bf16.msra.mxu0 0
    %1183 = vmatprep.subr.bf16.mxu0 0
    %1184 = vmatpush1.bf16.msra.mxu0 0
    %1185 = vmatprep.subr.bf16.mxu0 0
    %1186 = vmatpush1.bf16.msra.mxu0 0
    %1187 = vmatprep.subr.bf16.mxu0 0
    %1188 = vmatpush1.bf16.msra.mxu0 0
    %1189 = vmatprep.subr.bf16.mxu0 0
    %1190 = vmatpush1.bf16.msra.mxu0 0
    %1191 = vmatprep.subr.bf16.mxu0 0
    %1192 = vmatpush1.bf16.msra.mxu0 0
    %1193 = vmatprep.subr.bf16.mxu0 0
    %1194 = vmatpush1.bf16.msra.mxu0 0
    %1195 = vmatprep.subr.bf16.mxu0 0
    %1196 = vmatpush1.bf16.msra.mxu0 0
    %1197 = vmatprep.subr.bf16.mxu0 0
    %1198 = vmatpush1.bf16.msra.mxu0 0
    %1199 = vmatprep.subr.bf16.mxu0 0
    %1200 = vmatpush1.bf16.msra.mxu0 0
    %1201 = vmatprep.mubr.bf16.mxu0 0
    %1202 = vmatmul.mubr.bf16.gmra.mrb[0].mxu0 %v1164
    %v1203 = vpop.f32.mrb[0].mxu0
    %v1204 = vadd.f32 0.0, %v1203
    %v1205 = vpop.f32.mrb[0].mxu0
    %v1206 = vpop.f32.mrb[0].mxu0
    %v1207 = vpop.f32.mrb[0].mxu0
    %1208 = vdwg.mxu0
    %1211 = vrot.lane.b32.xlu0 %v703, 8
    %v1212 = vpop.permute.xlu0 %1211
    %1213 = vrot.lane.b32.xlu0 %v752, 8
    %v1214 = vpop.permute.xlu0 %1213
    %1219 = vrot.lane.b32.xlu0 %v930, 16
    %v1220 = vpop.permute.xlu0 %1219
    %1221 = vrot.lane.b32.xlu0 %v978, 16
    %v1222 = vpop.permute.xlu0 %1221
    %1227 = vrot.lane.b32.xlu0 %v1156, 24
    %v1228 = vpop.permute.xlu0 %1227
    %1229 = vrot.lane.b32.xlu0 %v1204, 24
    %v1230 = vpop.permute.xlu0 %1229
    %v1233 = vsel %vm309, %v474, %v1212
    %v1234 = vsel %vm309, %v520, %v1214
    %vm1235 = vcmask 130048
    %v1236 = vsel %vm1235, %v1233, %v1220
    %v1237 = vsel %vm1235, %v1234, %v1222
    %vm1238 = vcmask 195584
    %v1239 = vsel %vm1238, %v1236, %v1228
    %v1240 = vsel %vm1238, %v1237, %v1230
    %1241 = vst.msk [vmem:[#allocation2] sm:$0xff] %vm118, %v1239
    %1242 = vst.msk [vmem:[#allocation2 + $0x8] sm:$0xff] %vm118, %v1240
    %v1243 = vld [vmem:[#allocation2] sm:$0xff]
    %v1244 = vld [vmem:[#allocation2 + $0x8] sm:$0xff]
    %1245 = vst.msk [vmem:[#allocation11] sm:$0xff] %vm118, %v1243
    %1246 = vst.msk [vmem:[#allocation11 + $0x8] sm:$0xff] %vm118, %v1244
    // Predicated region
    $region50: #{tpu_custom_call.1} parent=1 // pred_check
      _
    $region51: #{tpu_custom_call.1} parent=1 // pred_check_branch
      %1248 = sbr.rel (0) target = $region53
    $region52: #{tpu_custom_call.1} parent=1 // pred_region
      %s1250 = ssub.s32 256, 256
      %1251 = vsyncadd [#allocation5], %s1250
      %s1252 = sshll.u32 [#allocation11], 4
      %s1253 = int_to_ptr.vmem [resolvable:$true] %s1252
      %1258 = dma.vmem_to_hbm [thread:$0]  %s1253, 256, %s8, [#allocation5], 128, 128, 8
    $region53: #{tpu_custom_call.1} parent=1 // pred_fallthru
      _
    // Predicated region
    $region54: #{tpu_custom_call.1} parent=1 // pred_check
      _
    $region55: #{tpu_custom_call.1} parent=1 // pred_check_branch
      %1260 = sbr.rel (0) target = $region57
    $region56: #{tpu_custom_call.1} parent=1 // pred_region
      %1261 = dma.done [#allocation5], 256
    $region57: #{tpu_custom_call.1} parent=1 // pred_fallthru
      _
    %1262 = vsyncpa [#allocation4], 1
    %1263 = vsyncpa [#allocation7], 1
    %1264 = vsyncpa [#allocation10], 1
    %1265 = vsyncpa [#allocation5], 1

</llo_original>
